<compile_context>
chip_gen: v7x
topology: tpu7x:2x2x1
jax: 0.10.0
libtpu: 0.0.40
codegen_flags: <defaults>
</compile_context>

<pallas_src>
import jax
import jax.numpy as jnp
from jax.experimental import pallas as pl
from jax.experimental.pallas import tpu as pltpu


def _make_rnn_kernel(num_layers, seq_len, use_bf16_matmul):
    """Kernel ref order: x_tm, [w_ih_t, w_hh_t, bias] * num_layers, fc_w_row, fc_b, out."""

    def kernel(*refs):
        x_ref = refs[0]
        layer_refs = refs[1:1 + 3 * num_layers]
        fc_w_ref, fc_b_ref, out_ref = refs[1 + 3 * num_layers:]

        seq = x_ref[...].astype(jnp.float32)              # (T, Bb, in_dim) time-major
        T, Bb = seq.shape[0], seq.shape[1]
        h = None

        for l in range(num_layers):
            w_ih = layer_refs[3 * l + 0][...]             # (in_dim, H)
            w_hh = layer_refs[3 * l + 1][...]             # (H, H)
            bias = layer_refs[3 * l + 2][...]             # (1, H) = b_ih + b_hh
            in_dim = w_ih.shape[0]
            H = w_hh.shape[0]
            last_layer = (l == num_layers - 1)

            # ---- hoisted input projection: one large matmul for all timesteps ----
            lhs = seq.reshape(T * Bb, in_dim)
            if use_bf16_matmul:
                proj = jnp.dot(lhs.astype(jnp.bfloat16), w_ih.astype(jnp.bfloat16),
                               preferred_element_type=jnp.float32)
            else:
                proj = jnp.dot(lhs, w_ih, preferred_element_type=jnp.float32)
            proj = (proj + bias).reshape(T, Bb, H)        # bias folded in once, pre-loop

            w_hh_mm = w_hh.astype(jnp.bfloat16) if use_bf16_matmul else w_hh

            # ---- serial recurrence: only h @ W_hh + relu per step ----
            h = jnp.zeros((Bb, H), jnp.float32)
            outs = []
            # T is small & static -> unrolling keeps the dependent matmuls visible
            # to the LLO scheduler.
            # TODO(synk): for large T, switch to lax.fori_loop(unroll=True) with a
            #             VMEM scratch for the inter-layer sequence to bound live ranges.
            for t in range(seq_len):
                h_mm = h.astype(jnp.bfloat16) if use_bf16_matmul else h
                rec = jnp.dot(h_mm, w_hh_mm, preferred_element_type=jnp.float32)
                h = jnp.maximum(proj[t] + rec, 0.0)       # relu nonlinearity
                if not last_layer:
                    outs.append(h)
            if not last_layer:
                seq = jnp.stack(outs, axis=0)             # (T, Bb, H) time-major

        # ---- fc head: VPU multiply + lane reduction (avoids an N=1 MXU matmul) ----
        out = jnp.sum(h * fc_w_ref[...], axis=-1, keepdims=True) + fc_b_ref[...]
        out_ref[...] = out.astype(out_ref.dtype)          # (Bb, 1)

    return kernel


def rnn_regressor_forward(x, params, *, block_b=None, use_bf16_matmul=False):
    """Pallas forward. x: (B, T, input_size) float32. Returns (B, 1) float32."""
    num_layers = len(params["layers"])
    B, T, in_dim = x.shape

    # Batch tile: must be a multiple of 8 (sublane) unless it equals the full batch.
    if block_b is None or block_b >= B or (B % block_b) or (block_b % 8):
        block_b = B

    x_tm = jnp.transpose(x, (1, 0, 2))                    # time-major (T, B, in_dim)

    inputs = [x_tm]
    in_specs = [pl.BlockSpec((T, block_b, in_dim), lambda i: (0, i, 0))]
    for (w_ih, w_hh, b_ih, b_hh) in params["layers"]:
        w_ih_t = w_ih.T                                   # (in_dim, H)
        w_hh_t = w_hh.T                                   # (H, H)
        bias = (b_ih + b_hh).reshape(1, -1)               # fold the two biases
        inputs += [w_ih_t, w_hh_t, bias]
        in_specs += [
            pl.BlockSpec(w_ih_t.shape, lambda i: (0, 0)),  # resident across the grid
            pl.BlockSpec(w_hh_t.shape, lambda i: (0, 0)),
            pl.BlockSpec(bias.shape, lambda i: (0, 0)),
        ]
    fc_w_row = params["fc_w"].reshape(1, -1)              # (1, H)
    fc_b = params["fc_b"].reshape(1, 1)                   # (1, 1)
    inputs += [fc_w_row, fc_b]
    in_specs += [pl.BlockSpec(fc_w_row.shape, lambda i: (0, 0)),
                 pl.BlockSpec(fc_b.shape, lambda i: (0, 0))]

    kernel = _make_rnn_kernel(num_layers, T, use_bf16_matmul)
    return pl.pallas_call(
        kernel,
        out_shape=jax.ShapeDtypeStruct((B, 1), jnp.float32),
        grid_spec=pltpu.PrefetchScalarGridSpec(
            num_scalar_prefetch=0,
            grid=(B // block_b,),
            in_specs=in_specs,
            out_specs=pl.BlockSpec((block_b, 1), lambda i: (i, 0)),
        ),
        compiler_params=pltpu.CompilerParams(
            dimension_semantics=("parallel",),            # batch tiles shardable across cores
            vmem_limit_bytes=32 * 1024 * 1024,
        ),
    )(*inputs)


def init_params(key, input_size, hidden_size, num_layers):
    """Deterministic init matching PyTorch shapes: U(-1/sqrt(H), 1/sqrt(H))."""
    bound = 1.0 / (hidden_size ** 0.5)
    layers = []
    for l in range(num_layers):
        in_dim = input_size if l == 0 else hidden_size
        key, k1, k2, k3, k4 = jax.random.split(key, 5)
        w_ih = jax.random.uniform(k1, (hidden_size, in_dim), jnp.float32, -bound, bound)
        w_hh = jax.random.uniform(k2, (hidden_size, hidden_size), jnp.float32, -bound, bound)
        b_ih = jax.random.uniform(k3, (hidden_size,), jnp.float32, -bound, bound)
        b_hh = jax.random.uniform(k4, (hidden_size,), jnp.float32, -bound, bound)
        layers.append((w_ih, w_hh, b_ih, b_hh))
    key, k1, k2 = jax.random.split(key, 3)
    fc_w = jax.random.uniform(k1, (1, hidden_size), jnp.float32, -bound, bound)
    fc_b = jax.random.uniform(k2, (1,), jnp.float32, -bound, bound)
    return {"layers": layers, "fc_w": fc_w, "fc_b": fc_b}


def reference_forward(x, params):
    """Pure-JAX reference with identical PyTorch RNN semantics (for verification)."""
    seq = x
    for (w_ih, w_hh, b_ih, b_hh) in params["layers"]:
        B, T, _ = seq.shape
        H = w_hh.shape[0]
        h = jnp.zeros((B, H), jnp.float32)
        outs = []
        for t in range(T):
            h = jax.nn.relu(seq[:, t, :] @ w_ih.T + b_ih + h @ w_hh.T + b_hh)
            outs.append(h)
        seq = jnp.stack(outs, axis=1)
    return seq[:, -1, :] @ params["fc_w"].T + params["fc_b"]


if __name__ == "__main__":
    batch, seq_len, input_size, hidden_size, num_layers = 2, 8, 16, 32, 2

    root = jax.random.PRNGKey(0)
    kx, kp = jax.random.split(root)
    x = jax.random.normal(kx, (batch, seq_len, input_size), jnp.float32)
    params = init_params(kp, input_size, hidden_size, num_layers)

    out = rnn_regressor_forward(x, params)          # f32 MXU path (exact semantics)
    out = jax.block_until_ready(out)

    ref = reference_forward(x, params)
    assert out.shape == (batch, 1)
    assert jnp.allclose(out, ref, rtol=1e-5, atol=1e-5), (out, ref)

    print("KERNEL_OK")
</pallas_src>

<mosaic_0001>
module attributes {stable_mosaic.version = 11 : i64} {
  func.func @kernel(%arg0: i32, %arg1: memref<8x2x16xf32, #tpu.memory_space<vmem>>, %arg2: memref<16x32xf32, #tpu.memory_space<vmem>>, %arg3: memref<32x32xf32, #tpu.memory_space<vmem>>, %arg4: memref<1x32xf32, #tpu.memory_space<vmem>>, %arg5: memref<32x32xf32, #tpu.memory_space<vmem>>, %arg6: memref<32x32xf32, #tpu.memory_space<vmem>>, %arg7: memref<1x32xf32, #tpu.memory_space<vmem>>, %arg8: memref<1x32xf32, #tpu.memory_space<vmem>>, %arg9: memref<1x1xf32, #tpu.memory_space<vmem>>, %arg10: memref<2x1xf32, #tpu.memory_space<vmem>>) attributes {dimension_semantics = [#tpu.dimension_semantics<parallel>], iteration_bounds = array<i64: 1>, scalar_prefetch = 0 : i64, scratch_operands = 0 : i64, tpu.core_type = #tpu.core_type<tc>, window_params = [{transform_indices = @transform_0, window_bounds = array<i64: 8, 2, 16>}, {pipeline_mode = #tpu.pipeline_mode<synchronous>, transform_indices = @transform_1, window_bounds = array<i64: 16, 32>}, {pipeline_mode = #tpu.pipeline_mode<synchronous>, transform_indices = @transform_2, window_bounds = array<i64: 32, 32>}, {pipeline_mode = #tpu.pipeline_mode<synchronous>, transform_indices = @transform_3, window_bounds = array<i64: 1, 32>}, {pipeline_mode = #tpu.pipeline_mode<synchronous>, transform_indices = @transform_4, window_bounds = array<i64: 32, 32>}, {pipeline_mode = #tpu.pipeline_mode<synchronous>, transform_indices = @transform_5, window_bounds = array<i64: 32, 32>}, {pipeline_mode = #tpu.pipeline_mode<synchronous>, transform_indices = @transform_6, window_bounds = array<i64: 1, 32>}, {pipeline_mode = #tpu.pipeline_mode<synchronous>, transform_indices = @transform_7, window_bounds = array<i64: 1, 32>}, {pipeline_mode = #tpu.pipeline_mode<synchronous>, transform_indices = @transform_8, window_bounds = array<i64: 1, 1>}, {transform_indices = @transform_9, window_bounds = array<i64: 2, 1>}]} {
    %c0 = arith.constant 0 : index
    %c0_0 = arith.constant 0 : index
    %c0_1 = arith.constant 0 : index
    %0 = vector.load %arg1[%c0, %c0_0, %c0_1] : memref<8x2x16xf32, #tpu.memory_space<vmem>>, vector<8x2x16xf32>
    %c0_2 = arith.constant 0 : index
    %c0_3 = arith.constant 0 : index
    %1 = vector.load %arg2[%c0_2, %c0_3] : memref<16x32xf32, #tpu.memory_space<vmem>>, vector<16x32xf32>
    %c0_4 = arith.constant 0 : index
    %c0_5 = arith.constant 0 : index
    %2 = vector.load %arg3[%c0_4, %c0_5] : memref<32x32xf32, #tpu.memory_space<vmem>>, vector<32x32xf32>
    %c0_6 = arith.constant 0 : index
    %c0_7 = arith.constant 0 : index
    %3 = vector.load %arg4[%c0_6, %c0_7] : memref<1x32xf32, #tpu.memory_space<vmem>>, vector<1x32xf32>
    %4 = vector.shape_cast %0 : vector<8x2x16xf32> to vector<16x16xf32>
    %cst = arith.constant dense<0.000000e+00> : vector<16x32xf32>
    %5 = tpu.matmul %4, %1, %cst {dimension_numbers = #tpu.dot_dimension_numbers<[1], [0], [0], [1], [0, 0, 1, 1], [], []>} : vector<16x16xf32>, vector<16x32xf32>, vector<16x32xf32> -> vector<16x32xf32>
    %6 = vector.broadcast %3 : vector<1x32xf32> to vector<16x32xf32>
    %7 = arith.addf %5, %6 : vector<16x32xf32>
    %8 = vector.shape_cast %7 : vector<16x32xf32> to vector<8x2x32xf32>
    %cst_8 = arith.constant 0.000000e+00 : f32
    %9 = vector.broadcast %cst_8 : f32 to vector<2x32xf32>
    %cst_9 = arith.constant dense<0.000000e+00> : vector<2x32xf32>
    %10 = tpu.matmul %9, %2, %cst_9 {dimension_numbers = #tpu.dot_dimension_numbers<[1], [0], [0], [1], [0, 0, 1, 1], [], []>} : vector<2x32xf32>, vector<32x32xf32>, vector<2x32xf32> -> vector<2x32xf32>
    %11 = vector.extract_strided_slice %8 {offsets = [0, 0, 0], sizes = [1, 2, 32], strides = [1, 1, 1]} : vector<8x2x32xf32> to vector<1x2x32xf32>
    %12 = vector.shape_cast %11 : vector<1x2x32xf32> to vector<2x32xf32>
    %13 = arith.addf %12, %10 : vector<2x32xf32>
    %cst_10 = arith.constant 0.000000e+00 : f32
    %14 = vector.broadcast %cst_10 : f32 to vector<2x32xf32>
    %15 = arith.maximumf %13, %14 : vector<2x32xf32>
    %cst_11 = arith.constant dense<0.000000e+00> : vector<2x32xf32>
    %16 = tpu.matmul %15, %2, %cst_11 {dimension_numbers = #tpu.dot_dimension_numbers<[1], [0], [0], [1], [0, 0, 1, 1], [], []>} : vector<2x32xf32>, vector<32x32xf32>, vector<2x32xf32> -> vector<2x32xf32>
    %17 = vector.extract_strided_slice %8 {offsets = [1, 0, 0], sizes = [1, 2, 32], strides = [1, 1, 1]} : vector<8x2x32xf32> to vector<1x2x32xf32>
    %18 = vector.shape_cast %17 : vector<1x2x32xf32> to vector<2x32xf32>
    %19 = arith.addf %18, %16 : vector<2x32xf32>
    %cst_12 = arith.constant 0.000000e+00 : f32
    %20 = vector.broadcast %cst_12 : f32 to vector<2x32xf32>
    %21 = arith.maximumf %19, %20 : vector<2x32xf32>
    %cst_13 = arith.constant dense<0.000000e+00> : vector<2x32xf32>
    %22 = tpu.matmul %21, %2, %cst_13 {dimension_numbers = #tpu.dot_dimension_numbers<[1], [0], [0], [1], [0, 0, 1, 1], [], []>} : vector<2x32xf32>, vector<32x32xf32>, vector<2x32xf32> -> vector<2x32xf32>
    %23 = vector.extract_strided_slice %8 {offsets = [2, 0, 0], sizes = [1, 2, 32], strides = [1, 1, 1]} : vector<8x2x32xf32> to vector<1x2x32xf32>
    %24 = vector.shape_cast %23 : vector<1x2x32xf32> to vector<2x32xf32>
    %25 = arith.addf %24, %22 : vector<2x32xf32>
    %cst_14 = arith.constant 0.000000e+00 : f32
    %26 = vector.broadcast %cst_14 : f32 to vector<2x32xf32>
    %27 = arith.maximumf %25, %26 : vector<2x32xf32>
    %cst_15 = arith.constant dense<0.000000e+00> : vector<2x32xf32>
    %28 = tpu.matmul %27, %2, %cst_15 {dimension_numbers = #tpu.dot_dimension_numbers<[1], [0], [0], [1], [0, 0, 1, 1], [], []>} : vector<2x32xf32>, vector<32x32xf32>, vector<2x32xf32> -> vector<2x32xf32>
    %29 = vector.extract_strided_slice %8 {offsets = [3, 0, 0], sizes = [1, 2, 32], strides = [1, 1, 1]} : vector<8x2x32xf32> to vector<1x2x32xf32>
    %30 = vector.shape_cast %29 : vector<1x2x32xf32> to vector<2x32xf32>
    %31 = arith.addf %30, %28 : vector<2x32xf32>
    %cst_16 = arith.constant 0.000000e+00 : f32
    %32 = vector.broadcast %cst_16 : f32 to vector<2x32xf32>
    %33 = arith.maximumf %31, %32 : vector<2x32xf32>
    %cst_17 = arith.constant dense<0.000000e+00> : vector<2x32xf32>
    %34 = tpu.matmul %33, %2, %cst_17 {dimension_numbers = #tpu.dot_dimension_numbers<[1], [0], [0], [1], [0, 0, 1, 1], [], []>} : vector<2x32xf32>, vector<32x32xf32>, vector<2x32xf32> -> vector<2x32xf32>
    %35 = vector.extract_strided_slice %8 {offsets = [4, 0, 0], sizes = [1, 2, 32], strides = [1, 1, 1]} : vector<8x2x32xf32> to vector<1x2x32xf32>
    %36 = vector.shape_cast %35 : vector<1x2x32xf32> to vector<2x32xf32>
    %37 = arith.addf %36, %34 : vector<2x32xf32>
    %cst_18 = arith.constant 0.000000e+00 : f32
    %38 = vector.broadcast %cst_18 : f32 to vector<2x32xf32>
    %39 = arith.maximumf %37, %38 : vector<2x32xf32>
    %cst_19 = arith.constant dense<0.000000e+00> : vector<2x32xf32>
    %40 = tpu.matmul %39, %2, %cst_19 {dimension_numbers = #tpu.dot_dimension_numbers<[1], [0], [0], [1], [0, 0, 1, 1], [], []>} : vector<2x32xf32>, vector<32x32xf32>, vector<2x32xf32> -> vector<2x32xf32>
    %41 = vector.extract_strided_slice %8 {offsets = [5, 0, 0], sizes = [1, 2, 32], strides = [1, 1, 1]} : vector<8x2x32xf32> to vector<1x2x32xf32>
    %42 = vector.shape_cast %41 : vector<1x2x32xf32> to vector<2x32xf32>
    %43 = arith.addf %42, %40 : vector<2x32xf32>
    %cst_20 = arith.constant 0.000000e+00 : f32
    %44 = vector.broadcast %cst_20 : f32 to vector<2x32xf32>
    %45 = arith.maximumf %43, %44 : vector<2x32xf32>
    %cst_21 = arith.constant dense<0.000000e+00> : vector<2x32xf32>
    %46 = tpu.matmul %45, %2, %cst_21 {dimension_numbers = #tpu.dot_dimension_numbers<[1], [0], [0], [1], [0, 0, 1, 1], [], []>} : vector<2x32xf32>, vector<32x32xf32>, vector<2x32xf32> -> vector<2x32xf32>
    %47 = vector.extract_strided_slice %8 {offsets = [6, 0, 0], sizes = [1, 2, 32], strides = [1, 1, 1]} : vector<8x2x32xf32> to vector<1x2x32xf32>
    %48 = vector.shape_cast %47 : vector<1x2x32xf32> to vector<2x32xf32>
    %49 = arith.addf %48, %46 : vector<2x32xf32>
    %cst_22 = arith.constant 0.000000e+00 : f32
    %50 = vector.broadcast %cst_22 : f32 to vector<2x32xf32>
    %51 = arith.maximumf %49, %50 : vector<2x32xf32>
    %cst_23 = arith.constant dense<0.000000e+00> : vector<2x32xf32>
    %52 = tpu.matmul %51, %2, %cst_23 {dimension_numbers = #tpu.dot_dimension_numbers<[1], [0], [0], [1], [0, 0, 1, 1], [], []>} : vector<2x32xf32>, vector<32x32xf32>, vector<2x32xf32> -> vector<2x32xf32>
    %53 = vector.extract_strided_slice %8 {offsets = [7, 0, 0], sizes = [1, 2, 32], strides = [1, 1, 1]} : vector<8x2x32xf32> to vector<1x2x32xf32>
    %54 = vector.shape_cast %53 : vector<1x2x32xf32> to vector<2x32xf32>
    %55 = arith.addf %54, %52 : vector<2x32xf32>
    %cst_24 = arith.constant 0.000000e+00 : f32
    %56 = vector.broadcast %cst_24 : f32 to vector<2x32xf32>
    %57 = arith.maximumf %55, %56 : vector<2x32xf32>
    %58 = vector.shape_cast %15 : vector<2x32xf32> to vector<1x2x32xf32>
    %59 = vector.shape_cast %21 : vector<2x32xf32> to vector<1x2x32xf32>
    %60 = vector.shape_cast %27 : vector<2x32xf32> to vector<1x2x32xf32>
    %61 = vector.shape_cast %33 : vector<2x32xf32> to vector<1x2x32xf32>
    %62 = vector.shape_cast %39 : vector<2x32xf32> to vector<1x2x32xf32>
    %63 = vector.shape_cast %45 : vector<2x32xf32> to vector<1x2x32xf32>
    %64 = vector.shape_cast %51 : vector<2x32xf32> to vector<1x2x32xf32>
    %65 = vector.shape_cast %57 : vector<2x32xf32> to vector<1x2x32xf32>
    %66 = tpu.concatenate %58, %59, %60, %61, %62, %63, %64, %65 in 0 : vector<1x2x32xf32>, vector<1x2x32xf32>, vector<1x2x32xf32>, vector<1x2x32xf32>, vector<1x2x32xf32>, vector<1x2x32xf32>, vector<1x2x32xf32>, vector<1x2x32xf32> -> vector<8x2x32xf32>
    %c0_25 = arith.constant 0 : index
    %c0_26 = arith.constant 0 : index
    %67 = vector.load %arg5[%c0_25, %c0_26] : memref<32x32xf32, #tpu.memory_space<vmem>>, vector<32x32xf32>
    %c0_27 = arith.constant 0 : index
    %c0_28 = arith.constant 0 : index
    %68 = vector.load %arg6[%c0_27, %c0_28] : memref<32x32xf32, #tpu.memory_space<vmem>>, vector<32x32xf32>
    %c0_29 = arith.constant 0 : index
    %c0_30 = arith.constant 0 : index
    %69 = vector.load %arg7[%c0_29, %c0_30] : memref<1x32xf32, #tpu.memory_space<vmem>>, vector<1x32xf32>
    %70 = vector.shape_cast %66 : vector<8x2x32xf32> to vector<16x32xf32>
    %cst_31 = arith.constant dense<0.000000e+00> : vector<16x32xf32>
    %71 = tpu.matmul %70, %67, %cst_31 {dimension_numbers = #tpu.dot_dimension_numbers<[1], [0], [0], [1], [0, 0, 1, 1], [], []>} : vector<16x32xf32>, vector<32x32xf32>, vector<16x32xf32> -> vector<16x32xf32>
    %72 = vector.broadcast %69 : vector<1x32xf32> to vector<16x32xf32>
    %73 = arith.addf %71, %72 : vector<16x32xf32>
    %74 = vector.shape_cast %73 : vector<16x32xf32> to vector<8x2x32xf32>
    %cst_32 = arith.constant 0.000000e+00 : f32
    %75 = vector.broadcast %cst_32 : f32 to vector<2x32xf32>
    %cst_33 = arith.constant dense<0.000000e+00> : vector<2x32xf32>
    %76 = tpu.matmul %75, %68, %cst_33 {dimension_numbers = #tpu.dot_dimension_numbers<[1], [0], [0], [1], [0, 0, 1, 1], [], []>} : vector<2x32xf32>, vector<32x32xf32>, vector<2x32xf32> -> vector<2x32xf32>
    %77 = vector.extract_strided_slice %74 {offsets = [0, 0, 0], sizes = [1, 2, 32], strides = [1, 1, 1]} : vector<8x2x32xf32> to vector<1x2x32xf32>
    %78 = vector.shape_cast %77 : vector<1x2x32xf32> to vector<2x32xf32>
    %79 = arith.addf %78, %76 : vector<2x32xf32>
    %cst_34 = arith.constant 0.000000e+00 : f32
    %80 = vector.broadcast %cst_34 : f32 to vector<2x32xf32>
    %81 = arith.maximumf %79, %80 : vector<2x32xf32>
    %cst_35 = arith.constant dense<0.000000e+00> : vector<2x32xf32>
    %82 = tpu.matmul %81, %68, %cst_35 {dimension_numbers = #tpu.dot_dimension_numbers<[1], [0], [0], [1], [0, 0, 1, 1], [], []>} : vector<2x32xf32>, vector<32x32xf32>, vector<2x32xf32> -> vector<2x32xf32>
    %83 = vector.extract_strided_slice %74 {offsets = [1, 0, 0], sizes = [1, 2, 32], strides = [1, 1, 1]} : vector<8x2x32xf32> to vector<1x2x32xf32>
    %84 = vector.shape_cast %83 : vector<1x2x32xf32> to vector<2x32xf32>
    %85 = arith.addf %84, %82 : vector<2x32xf32>
    %cst_36 = arith.constant 0.000000e+00 : f32
    %86 = vector.broadcast %cst_36 : f32 to vector<2x32xf32>
    %87 = arith.maximumf %85, %86 : vector<2x32xf32>
    %cst_37 = arith.constant dense<0.000000e+00> : vector<2x32xf32>
    %88 = tpu.matmul %87, %68, %cst_37 {dimension_numbers = #tpu.dot_dimension_numbers<[1], [0], [0], [1], [0, 0, 1, 1], [], []>} : vector<2x32xf32>, vector<32x32xf32>, vector<2x32xf32> -> vector<2x32xf32>
    %89 = vector.extract_strided_slice %74 {offsets = [2, 0, 0], sizes = [1, 2, 32], strides = [1, 1, 1]} : vector<8x2x32xf32> to vector<1x2x32xf32>
    %90 = vector.shape_cast %89 : vector<1x2x32xf32> to vector<2x32xf32>
    %91 = arith.addf %90, %88 : vector<2x32xf32>
    %cst_38 = arith.constant 0.000000e+00 : f32
    %92 = vector.broadcast %cst_38 : f32 to vector<2x32xf32>
    %93 = arith.maximumf %91, %92 : vector<2x32xf32>
    %cst_39 = arith.constant dense<0.000000e+00> : vector<2x32xf32>
    %94 = tpu.matmul %93, %68, %cst_39 {dimension_numbers = #tpu.dot_dimension_numbers<[1], [0], [0], [1], [0, 0, 1, 1], [], []>} : vector<2x32xf32>, vector<32x32xf32>, vector<2x32xf32> -> vector<2x32xf32>
    %95 = vector.extract_strided_slice %74 {offsets = [3, 0, 0], sizes = [1, 2, 32], strides = [1, 1, 1]} : vector<8x2x32xf32> to vector<1x2x32xf32>
    %96 = vector.shape_cast %95 : vector<1x2x32xf32> to vector<2x32xf32>
    %97 = arith.addf %96, %94 : vector<2x32xf32>
    %cst_40 = arith.constant 0.000000e+00 : f32
    %98 = vector.broadcast %cst_40 : f32 to vector<2x32xf32>
    %99 = arith.maximumf %97, %98 : vector<2x32xf32>
    %cst_41 = arith.constant dense<0.000000e+00> : vector<2x32xf32>
    %100 = tpu.matmul %99, %68, %cst_41 {dimension_numbers = #tpu.dot_dimension_numbers<[1], [0], [0], [1], [0, 0, 1, 1], [], []>} : vector<2x32xf32>, vector<32x32xf32>, vector<2x32xf32> -> vector<2x32xf32>
    %101 = vector.extract_strided_slice %74 {offsets = [4, 0, 0], sizes = [1, 2, 32], strides = [1, 1, 1]} : vector<8x2x32xf32> to vector<1x2x32xf32>
    %102 = vector.shape_cast %101 : vector<1x2x32xf32> to vector<2x32xf32>
    %103 = arith.addf %102, %100 : vector<2x32xf32>
    %cst_42 = arith.constant 0.000000e+00 : f32
    %104 = vector.broadcast %cst_42 : f32 to vector<2x32xf32>
    %105 = arith.maximumf %103, %104 : vector<2x32xf32>
    %cst_43 = arith.constant dense<0.000000e+00> : vector<2x32xf32>
    %106 = tpu.matmul %105, %68, %cst_43 {dimension_numbers = #tpu.dot_dimension_numbers<[1], [0], [0], [1], [0, 0, 1, 1], [], []>} : vector<2x32xf32>, vector<32x32xf32>, vector<2x32xf32> -> vector<2x32xf32>
    %107 = vector.extract_strided_slice %74 {offsets = [5, 0, 0], sizes = [1, 2, 32], strides = [1, 1, 1]} : vector<8x2x32xf32> to vector<1x2x32xf32>
    %108 = vector.shape_cast %107 : vector<1x2x32xf32> to vector<2x32xf32>
    %109 = arith.addf %108, %106 : vector<2x32xf32>
    %cst_44 = arith.constant 0.000000e+00 : f32
    %110 = vector.broadcast %cst_44 : f32 to vector<2x32xf32>
    %111 = arith.maximumf %109, %110 : vector<2x32xf32>
    %cst_45 = arith.constant dense<0.000000e+00> : vector<2x32xf32>
    %112 = tpu.matmul %111, %68, %cst_45 {dimension_numbers = #tpu.dot_dimension_numbers<[1], [0], [0], [1], [0, 0, 1, 1], [], []>} : vector<2x32xf32>, vector<32x32xf32>, vector<2x32xf32> -> vector<2x32xf32>
    %113 = vector.extract_strided_slice %74 {offsets = [6, 0, 0], sizes = [1, 2, 32], strides = [1, 1, 1]} : vector<8x2x32xf32> to vector<1x2x32xf32>
    %114 = vector.shape_cast %113 : vector<1x2x32xf32> to vector<2x32xf32>
    %115 = arith.addf %114, %112 : vector<2x32xf32>
    %cst_46 = arith.constant 0.000000e+00 : f32
    %116 = vector.broadcast %cst_46 : f32 to vector<2x32xf32>
    %117 = arith.maximumf %115, %116 : vector<2x32xf32>
    %cst_47 = arith.constant dense<0.000000e+00> : vector<2x32xf32>
    %118 = tpu.matmul %117, %68, %cst_47 {dimension_numbers = #tpu.dot_dimension_numbers<[1], [0], [0], [1], [0, 0, 1, 1], [], []>} : vector<2x32xf32>, vector<32x32xf32>, vector<2x32xf32> -> vector<2x32xf32>
    %119 = vector.extract_strided_slice %74 {offsets = [7, 0, 0], sizes = [1, 2, 32], strides = [1, 1, 1]} : vector<8x2x32xf32> to vector<1x2x32xf32>
    %120 = vector.shape_cast %119 : vector<1x2x32xf32> to vector<2x32xf32>
    %121 = arith.addf %120, %118 : vector<2x32xf32>
    %cst_48 = arith.constant 0.000000e+00 : f32
    %122 = vector.broadcast %cst_48 : f32 to vector<2x32xf32>
    %123 = arith.maximumf %121, %122 : vector<2x32xf32>
    %c0_49 = arith.constant 0 : index
    %c0_50 = arith.constant 0 : index
    %124 = vector.load %arg8[%c0_49, %c0_50] : memref<1x32xf32, #tpu.memory_space<vmem>>, vector<1x32xf32>
    %125 = vector.broadcast %124 : vector<1x32xf32> to vector<2x32xf32>
    %126 = arith.mulf %123, %125 : vector<2x32xf32>
    %cst_51 = arith.constant dense<0.000000e+00> : vector<2xf32>
    %127 = vector.multi_reduction <add>, %126, %cst_51 [1] : vector<2x32xf32> to vector<2xf32>
    %128 = vector.shape_cast %127 : vector<2xf32> to vector<2x1xf32>
    %c0_52 = arith.constant 0 : index
    %c0_53 = arith.constant 0 : index
    %129 = vector.load %arg9[%c0_52, %c0_53] : memref<1x1xf32, #tpu.memory_space<vmem>>, vector<1x1xf32>
    %130 = vector.broadcast %129 : vector<1x1xf32> to vector<2x1xf32>
    %131 = arith.addf %128, %130 : vector<2x1xf32>
    %c0_54 = arith.constant 0 : index
    %c0_55 = arith.constant 0 : index
    %132 = vector.load %arg10[%c0_54, %c0_55] : memref<2x1xf32, #tpu.memory_space<vmem>>, vector<2x1xf32>
    tpu.vector_store %arg10[%c0_54, %c0_55], %131 {strides = array<i32>} : memref<2x1xf32, #tpu.memory_space<vmem>>, vector<2x1xf32>,
    return
  }
  func.func @transform_0(%arg0: i32) -> (i32, i32, i32) {
    %c0_i32 = arith.constant 0 : i32
    %c0_i32_0 = arith.constant 0 : i32
    %c0_i32_1 = arith.constant 0 : i32
    return %c0_i32, %arg0, %c0_i32_0 : i32, i32, i32
  }
  func.func @transform_1(%arg0: i32) -> (i32, i32) {
    %c0_i32 = arith.constant 0 : i32
    %c0_i32_0 = arith.constant 0 : i32
    %c0_i32_1 = arith.constant 0 : i32
    return %c0_i32, %c0_i32_0 : i32, i32
  }
  func.func @transform_2(%arg0: i32) -> (i32, i32) {
    %c0_i32 = arith.constant 0 : i32
    %c0_i32_0 = arith.constant 0 : i32
    %c0_i32_1 = arith.constant 0 : i32
    return %c0_i32, %c0_i32_0 : i32, i32
  }
  func.func @transform_3(%arg0: i32) -> (i32, i32) {
    %c0_i32 = arith.constant 0 : i32
    %c0_i32_0 = arith.constant 0 : i32
    %c0_i32_1 = arith.constant 0 : i32
    return %c0_i32, %c0_i32_0 : i32, i32
  }
  func.func @transform_4(%arg0: i32) -> (i32, i32) {
    %c0_i32 = arith.constant 0 : i32
    %c0_i32_0 = arith.constant 0 : i32
    %c0_i32_1 = arith.constant 0 : i32
    return %c0_i32, %c0_i32_0 : i32, i32
  }
  func.func @transform_5(%arg0: i32) -> (i32, i32) {
    %c0_i32 = arith.constant 0 : i32
    %c0_i32_0 = arith.constant 0 : i32
    %c0_i32_1 = arith.constant 0 : i32
    return %c0_i32, %c0_i32_0 : i32, i32
  }
  func.func @transform_6(%arg0: i32) -> (i32, i32) {
    %c0_i32 = arith.constant 0 : i32
    %c0_i32_0 = arith.constant 0 : i32
    %c0_i32_1 = arith.constant 0 : i32
    return %c0_i32, %c0_i32_0 : i32, i32
  }
  func.func @transform_7(%arg0: i32) -> (i32, i32) {
    %c0_i32 = arith.constant 0 : i32
    %c0_i32_0 = arith.constant 0 : i32
    %c0_i32_1 = arith.constant 0 : i32
    return %c0_i32, %c0_i32_0 : i32, i32
  }
  func.func @transform_8(%arg0: i32) -> (i32, i32) {
    %c0_i32 = arith.constant 0 : i32
    %c0_i32_0 = arith.constant 0 : i32
    %c0_i32_1 = arith.constant 0 : i32
    return %c0_i32, %c0_i32_0 : i32, i32
  }
  func.func @transform_9(%arg0: i32) -> (i32, i32) {
    %c0_i32 = arith.constant 0 : i32
    %c0_i32_0 = arith.constant 0 : i32
    return %arg0, %c0_i32 : i32, i32
  }
}

</mosaic_0001>

<llo_original>
// kernel: tpu_custom_call.1
$region0: #{tpu_custom_call.1}
  #allocation0 [shape = 'u32[]', space=smem, size = 0x4, offset = 0x4, fixed_abs, tag = 'smem constant byte address 0x4 - core index']
  #allocation1 [shape = 'u32[144,128]{1,0:T(1,128)}', space=vmem, size = 0x12000, scoped, tag = 'internal scratch']
  #allocation2 [shape = 'f32[1,1]{1,0:T(1,128)S(1)}', space=vmem, size = 0x200, scoped, tag = 'scoped memory for tpu_custom_call.1']
  %s0 = inlined_call_operand.hbm [shape: f32[8,2,16], index: 0, kind: input, shape index: {}]
  %s1 = inlined_call_operand.hbm [shape: f32[16,32], index: 1, kind: input, shape index: {}]
  %s2 = inlined_call_operand.hbm [shape: f32[32,32], index: 2, kind: input, shape index: {}]
  %s3 = inlined_call_operand.vmem [shape: f32[1,32], index: 3, kind: input, shape index: {}]
  %s4 = inlined_call_operand.hbm [shape: f32[32,32], index: 4, kind: input, shape index: {}]
  %s5 = inlined_call_operand.hbm [shape: f32[32,32], index: 5, kind: input, shape index: {}]
  %s6 = inlined_call_operand.vmem [shape: f32[1,32], index: 6, kind: input, shape index: {}]
  %s7 = inlined_call_operand.vmem [shape: f32[1,32], index: 7, kind: input, shape index: {}]
  %s8 = inlined_call_operand.<no memory space> [shape: f32[1,1], index: 8, kind: input, shape index: {}]
  %s9 = inlined_call_operand.vmem [shape: f32[2,1], index: 9, kind: output, shape index: {}]
  %s10 = sld [smem:[#allocation0]]
  $region66: #{tpu_custom_call.1} parent=0
    _
  %s12 = ssub.s32 1, %s10
  %s13 = scalar_select 0, %s12, %s10
  %v14 = vstv %s8
  %15 = vst [vmem:[#allocation2] sm:$0x1] %v14
  $region1: #{tpu_custom_call.1} parent=0
    #allocation3 [shape = 'u8[8192]{0}', space=vmem, size = 0x2000, scoped, tag = 'input window, operand 0, single buffered']
    #allocation4 [shape = 's32[1]{0}', space=sflag, size = 0x4, scoped, tag = 'scoped memory for tpu_custom_call.1']
    #allocation5 [shape = 'u8[8192]{0}', space=vmem, size = 0x2000, scoped, tag = 'input window, operand 1, single buffered']
    #allocation6 [shape = 's32[1]{0}', space=sflag, size = 0x4, scoped, tag = 'scoped memory for tpu_custom_call.1']
    #allocation7 [shape = 'u8[16384]{0}', space=vmem, size = 0x4000, scoped, tag = 'input window, operand 2, single buffered']
    #allocation8 [shape = 'u8[16384]{0}', space=vmem, size = 0x4000, scoped, tag = 'input window, operand 4, single buffered']
    #allocation9 [shape = 's32[1]{0}', space=sflag, size = 0x4, scoped, tag = 'scoped memory for tpu_custom_call.1']
    #allocation10 [shape = 'u8[16384]{0}', space=vmem, size = 0x4000, scoped, tag = 'input window, operand 5, single buffered']
    %16 = vsyncpa [#allocation4], 0
    %17 = vsyncpa [#allocation6], 0
    %18 = vsyncpa [#allocation9], 0
    // Predicated region
    $region2: #{tpu_custom_call.1} parent=1 // pred_check
      _
    $region3: #{tpu_custom_call.1} parent=1 // pred_check_branch
      %20 = sbr.rel (0) target = $region5
    $region4: #{tpu_custom_call.1} parent=1 // pred_region
      %s22 = ssub.s32 256, 256
      %23 = vsyncadd [#allocation4], %s22
      %s24 = sshll.u32 [#allocation3], 4
      %s25 = int_to_ptr.vmem [resolvable:$true] %s24
      %30 = dma.hbm_to_vmem [thread:$0]  %s0, 256, %s25, [#allocation4], 32, 32, 2
    $region5: #{tpu_custom_call.1} parent=1 // pred_fallthru
      _
    // Predicated region
    $region6: #{tpu_custom_call.1} parent=1 // pred_check
      _
    $region7: #{tpu_custom_call.1} parent=1 // pred_check_branch
      %32 = sbr.rel (0) target = $region9
    $region8: #{tpu_custom_call.1} parent=1 // pred_region
      %s34 = ssub.s32 256, 256
      %35 = vsyncadd [#allocation6], %s34
      %s36 = sshll.u32 [#allocation5], 4
      %s37 = int_to_ptr.vmem [resolvable:$true] %s36
      %42 = dma.hbm_to_vmem [thread:$0]  %s1, 256, %s37, [#allocation6], 128, 128, 8
    $region9: #{tpu_custom_call.1} parent=1 // pred_fallthru
      _
    // Predicated region
    $region10: #{tpu_custom_call.1} parent=1 // pred_check
      _
    $region11: #{tpu_custom_call.1} parent=1 // pred_check_branch
      %44 = sbr.rel (0) target = $region13
    $region12: #{tpu_custom_call.1} parent=1 // pred_region
      %s46 = ssub.s32 512, 512
      %47 = vsyncadd [#allocation6], %s46
      %s48 = sshll.u32 [#allocation7], 4
      %s49 = int_to_ptr.vmem [resolvable:$true] %s48
      %54 = dma.hbm_to_vmem [thread:$0]  %s2, 512, %s49, [#allocation6], 128, 128, 8
    $region13: #{tpu_custom_call.1} parent=1 // pred_fallthru
      _
    // Predicated region
    $region14: #{tpu_custom_call.1} parent=1 // pred_check
      _
    $region15: #{tpu_custom_call.1} parent=1 // pred_check_branch
      %56 = sbr.rel (0) target = $region17
    $region16: #{tpu_custom_call.1} parent=1 // pred_region
      _
    $region17: #{tpu_custom_call.1} parent=1 // pred_fallthru
      _
    // Predicated region
    $region18: #{tpu_custom_call.1} parent=1 // pred_check
      _
    $region19: #{tpu_custom_call.1} parent=1 // pred_check_branch
      %58 = sbr.rel (0) target = $region21
    $region20: #{tpu_custom_call.1} parent=1 // pred_region
      %s60 = ssub.s32 512, 512
      %61 = vsyncadd [#allocation9], %s60
      %s62 = sshll.u32 [#allocation8], 4
      %s63 = int_to_ptr.vmem [resolvable:$true] %s62
      %68 = dma.hbm_to_vmem [thread:$0]  %s4, 512, %s63, [#allocation9], 128, 128, 8
    $region21: #{tpu_custom_call.1} parent=1 // pred_fallthru
      _
    // Predicated region
    $region22: #{tpu_custom_call.1} parent=1 // pred_check
      _
    $region23: #{tpu_custom_call.1} parent=1 // pred_check_branch
      %70 = sbr.rel (0) target = $region25
    $region24: #{tpu_custom_call.1} parent=1 // pred_region
      %s72 = ssub.s32 512, 512
      %73 = vsyncadd [#allocation9], %s72
      %s74 = sshll.u32 [#allocation10], 4
      %s75 = int_to_ptr.vmem [resolvable:$true] %s74
      %80 = dma.hbm_to_vmem [thread:$0]  %s5, 512, %s75, [#allocation9], 128, 128, 8
    $region25: #{tpu_custom_call.1} parent=1 // pred_fallthru
      _
    // Predicated region
    $region26: #{tpu_custom_call.1} parent=1 // pred_check
      _
    $region27: #{tpu_custom_call.1} parent=1 // pred_check_branch
      %82 = sbr.rel (0) target = $region29
    $region28: #{tpu_custom_call.1} parent=1 // pred_region
      _
    $region29: #{tpu_custom_call.1} parent=1 // pred_fallthru
      _
    // Predicated region
    $region30: #{tpu_custom_call.1} parent=1 // pred_check
      _
    $region31: #{tpu_custom_call.1} parent=1 // pred_check_branch
      %84 = sbr.rel (0) target = $region33
    $region32: #{tpu_custom_call.1} parent=1 // pred_region
      _
    $region33: #{tpu_custom_call.1} parent=1 // pred_fallthru
      _
    // Predicated region
    $region34: #{tpu_custom_call.1} parent=1 // pred_check
      _
    $region35: #{tpu_custom_call.1} parent=1 // pred_check_branch
      %86 = sbr.rel (0) target = $region37
    $region36: #{tpu_custom_call.1} parent=1 // pred_region
      _
    $region37: #{tpu_custom_call.1} parent=1 // pred_fallthru
      _
    // Predicated region
    $region38: #{tpu_custom_call.1} parent=1 // pred_check
      _
    $region39: #{tpu_custom_call.1} parent=1 // pred_check_branch
      %88 = sbr.rel (0) target = $region41
    $region40: #{tpu_custom_call.1} parent=1 // pred_region
      %89 = dma.done [#allocation4], 256
    $region41: #{tpu_custom_call.1} parent=1 // pred_fallthru
      _
    // Predicated region
    $region42: #{tpu_custom_call.1} parent=1 // pred_check
      _
    $region43: #{tpu_custom_call.1} parent=1 // pred_check_branch
      %91 = sbr.rel (0) target = $region45
    $region44: #{tpu_custom_call.1} parent=1 // pred_region
      %92 = dma.done [#allocation6], 256
    $region45: #{tpu_custom_call.1} parent=1 // pred_fallthru
      _
    // Predicated region
    $region46: #{tpu_custom_call.1} parent=1 // pred_check
      _
    $region47: #{tpu_custom_call.1} parent=1 // pred_check_branch
      %94 = sbr.rel (0) target = $region49
    $region48: #{tpu_custom_call.1} parent=1 // pred_region
      %95 = dma.done [#allocation6], 512
    $region49: #{tpu_custom_call.1} parent=1 // pred_fallthru
      _
    // Predicated region
    $region50: #{tpu_custom_call.1} parent=1 // pred_check
      _
    $region51: #{tpu_custom_call.1} parent=1 // pred_check_branch
      %97 = sbr.rel (0) target = $region53
    $region52: #{tpu_custom_call.1} parent=1 // pred_region
      %98 = dma.done [#allocation9], 512
    $region53: #{tpu_custom_call.1} parent=1 // pred_fallthru
      _
    // Predicated region
    $region54: #{tpu_custom_call.1} parent=1 // pred_check
      _
    $region55: #{tpu_custom_call.1} parent=1 // pred_check_branch
      %100 = sbr.rel (0) target = $region57
    $region56: #{tpu_custom_call.1} parent=1 // pred_region
      %101 = dma.done [#allocation9], 512
    $region57: #{tpu_custom_call.1} parent=1 // pred_fallthru
      _
    %v102 = vld [vmem:[#allocation3] sm:$0x3]
    %v103 = vld [vmem:[#allocation3 + $0x2] sm:$0x3]
    %v104 = vld [vmem:[#allocation3 + $0x4] sm:$0x3]
    %v105 = vld [vmem:[#allocation3 + $0x6] sm:$0x3]
    %v106 = vld [vmem:[#allocation3 + $0x8] sm:$0x3]
    %v107 = vld [vmem:[#allocation3 + $0xa] sm:$0x3]
    %v108 = vld [vmem:[#allocation3 + $0xc] sm:$0x3]
    %v109 = vld [vmem:[#allocation3 + $0xe] sm:$0x3]
    %v110 = vld [vmem:[#allocation5] sm:$0xff]
    %v111 = vld [vmem:[#allocation5 + $0x8] sm:$0xff]
    %v112 = vld [vmem:[#allocation7] sm:$0xff]
    %v113 = vld [vmem:[#allocation7 + $0x8] sm:$0xff]
    %v114 = vld [vmem:[#allocation7 + $0x10] sm:$0xff]
    %v115 = vld [vmem:[#allocation7 + $0x18] sm:$0xff]
    %v116 = vld [vmem:[%s3] sm:$0x1]
    %v118 = vlaneseq
    %v119 = vshrl.u32 %v118, 7
    %v120 = vsub.s32 0, %v119
    %v121 = vrot.slane %v116, %v120
    %v131 = vcombine.low %v102, %v103
    %v132 = vcombine.low %v104, %v105
    %v134 = vunpack.c.l.s4 1983009808
    %v135 = vunpack.c.0.s8 %v134
    %v136 = vlaneseq
    %v137 = vshrl.u32 %v136, 7
    %v138 = vsub.s32 %v135, %v137
    %v139 = vrot.slane %v131, %v138
    %v141 = vunpack.c.l.s4 1983009808
    %v142 = vunpack.c.0.s8 %v141
    %v143 = vlaneseq
    %v144 = vshrl.u32 %v143, 7
    %v145 = vsub.s32 %v142, %v144
    %v146 = vrot.slane %v132, %v145
    %v147 = vcombine.low %v139, %v146
    %v148 = vcombine.low %v106, %v107
    %v149 = vcombine.low %v108, %v109
    %v151 = vunpack.c.l.s4 1983009808
    %v152 = vunpack.c.0.s8 %v151
    %v153 = vlaneseq
    %v154 = vshrl.u32 %v153, 7
    %v155 = vsub.s32 %v152, %v154
    %v156 = vrot.slane %v148, %v155
    %v158 = vunpack.c.l.s4 1983009808
    %v159 = vunpack.c.0.s8 %v158
    %v160 = vlaneseq
    %v161 = vshrl.u32 %v160, 7
    %v162 = vsub.s32 %v159, %v161
    %v163 = vrot.slane %v149, %v162
    %v164 = vcombine.low %v156, %v163
    %vm165 = vcmask 130048
    %v166 = vsel %vm165, %v147, 0
    %v168 = vsel %vm165, %v164, 0
    %170 = vmatprep.subr.mxu0 0.0
    %171 = vmatpush1.msra.mxu0 %v110
    %172 = vmatprep.subr.mxu0 0.0
    %173 = vmatpush1.msra.mxu0 %v111
    %174 = vmatprep.subr.mxu0 0.0
    %175 = vmatpush1.msra.mxu0 0.0
    %176 = vmatprep.subr.mxu0 0.0
    %177 = vmatpush1.msra.mxu0 0.0
    %178 = vmatprep.subr.mxu0 0.0
    %179 = vmatpush1.msra.mxu0 0.0
    %180 = vmatprep.subr.mxu0 0.0
    %181 = vmatpush1.msra.mxu0 0.0
    %182 = vmatprep.subr.mxu0 0.0
    %183 = vmatpush1.msra.mxu0 0.0
    %184 = vmatprep.subr.mxu0 0.0
    %185 = vmatpush1.msra.mxu0 0.0
    %186 = vmatprep.subr.mxu0 0.0
    %187 = vmatpush1.msra.mxu0 0.0
    %188 = vmatprep.subr.mxu0 0.0
    %189 = vmatpush1.msra.mxu0 0.0
    %190 = vmatprep.subr.mxu0 0.0
    %191 = vmatpush1.msra.mxu0 0.0
    %192 = vmatprep.subr.mxu0 0.0
    %193 = vmatpush1.msra.mxu0 0.0
    %194 = vmatprep.subr.mxu0 0.0
    %195 = vmatpush1.msra.mxu0 0.0
    %196 = vmatprep.subr.mxu0 0.0
    %197 = vmatpush1.msra.mxu0 0.0
    %198 = vmatprep.subr.mxu0 0.0
    %199 = vmatpush1.msra.mxu0 0.0
    %200 = vmatprep.subr.mxu0 0.0
    %201 = vmatpush1.msra.mxu0 0.0
    %202 = vmatprep.subr.mxu0 0.0
    %203 = vmatpush1.msra.mxu0 0.0
    %204 = vmatprep.subr.mxu0 0.0
    %205 = vmatpush1.msra.mxu0 0.0
    %206 = vmatprep.subr.mxu0 0.0
    %207 = vmatpush1.msra.mxu0 0.0
    %208 = vmatprep.subr.mxu0 0.0
    %209 = vmatpush1.msra.mxu0 0.0
    %210 = vmatprep.subr.mxu0 0.0
    %211 = vmatpush1.msra.mxu0 0.0
    %212 = vmatprep.subr.mxu0 0.0
    %213 = vmatpush1.msra.mxu0 0.0
    %214 = vmatprep.subr.mxu0 0.0
    %215 = vmatpush1.msra.mxu0 0.0
    %216 = vmatprep.subr.mxu0 0.0
    %217 = vmatpush1.msra.mxu0 0.0
    %218 = vmatprep.subr.mxu0 0.0
    %219 = vmatpush1.msra.mxu0 0.0
    %220 = vmatprep.subr.mxu0 0.0
    %221 = vmatpush1.msra.mxu0 0.0
    %222 = vmatprep.subr.mxu0 0.0
    %223 = vmatpush1.msra.mxu0 0.0
    %224 = vmatprep.subr.mxu0 0.0
    %225 = vmatpush1.msra.mxu0 0.0
    %226 = vmatprep.subr.mxu0 0.0
    %227 = vmatpush1.msra.mxu0 0.0
    %228 = vmatprep.subr.mxu0 0.0
    %229 = vmatpush1.msra.mxu0 0.0
    %230 = vmatprep.subr.mxu0 0.0
    %231 = vmatpush1.msra.mxu0 0.0
    %232 = vmatprep.subr.mxu0 0.0
    %233 = vmatpush1.msra.mxu0 0.0
    %234 = vmatprep.mubr.f32.mxu0 0.0
    %235 = vmatmul.mubr.f32.gmra.mrb[0].mxu0 %v166
    %v236 = vpop.f32.mrb[0].mxu0
    %v237 = vadd.f32 %v121, %v236
    %v238 = vpop.f32.mrb[0].mxu0
    %239 = vmatprep.mubr.f32.mxu0 0.0
    %240 = vmatmul.mubr.f32.gmra.mrb[0].mxu0 %v168
    %v241 = vpop.f32.mrb[0].mxu0
    %v242 = vadd.f32 %v121, %v241
    %v243 = vpop.f32.mrb[0].mxu0
    %244 = vdwg.mxu0
    %v247 = vcombine.high %v237, %v237
    %v249 = vunpack.c.l.s4 1983009808
    %v250 = vunpack.c.0.s8 %v249
    %v251 = vlaneseq
    %v252 = vshrl.u32 %v251, 7
    %v253 = vsub.s32 %v250, %v252
    %v254 = vrot.slane %v237, %v253
    %v256 = vunpack.c.l.s4 1983009808
    %v257 = vunpack.c.0.s8 %v256
    %v258 = vlaneseq
    %v259 = vshrl.u32 %v258, 7
    %v260 = vsub.s32 %v257, %v259
    %v261 = vrot.slane %v247, %v260
    %v262 = vcombine.high %v254, %v254
    %v263 = vcombine.high %v261, %v261
    %v264 = vcombine.high %v242, %v242
    %v266 = vunpack.c.l.s4 1983009808
    %v267 = vunpack.c.0.s8 %v266
    %v268 = vlaneseq
    %v269 = vshrl.u32 %v268, 7
    %v270 = vsub.s32 %v267, %v269
    %v271 = vrot.slane %v242, %v270
    %v273 = vunpack.c.l.s4 1983009808
    %v274 = vunpack.c.0.s8 %v273
    %v275 = vlaneseq
    %v276 = vshrl.u32 %v275, 7
    %v277 = vsub.s32 %v274, %v276
    %v278 = vrot.slane %v264, %v277
    %v279 = vcombine.high %v271, %v271
    %v280 = vcombine.high %v278, %v278
    %vm289 = vcmask 261120
    %v291 = vsel %vm289, 0.0, 0
    %293 = vmatprep.subr.mxu0 0.0
    %294 = vmatpush1.msra.mxu0 %v112
    %295 = vmatprep.subr.mxu0 0.0
    %296 = vmatpush1.msra.mxu0 %v113
    %297 = vmatprep.subr.mxu0 0.0
    %298 = vmatpush1.msra.mxu0 %v114
    %299 = vmatprep.subr.mxu0 0.0
    %300 = vmatpush1.msra.mxu0 %v115
    %301 = vmatprep.subr.mxu0 0.0
    %302 = vmatpush1.msra.mxu0 0.0
    %303 = vmatprep.subr.mxu0 0.0
    %304 = vmatpush1.msra.mxu0 0.0
    %305 = vmatprep.subr.mxu0 0.0
    %306 = vmatpush1.msra.mxu0 0.0
    %307 = vmatprep.subr.mxu0 0.0
    %308 = vmatpush1.msra.mxu0 0.0
    %309 = vmatprep.subr.mxu0 0.0
    %310 = vmatpush1.msra.mxu0 0.0
    %311 = vmatprep.subr.mxu0 0.0
    %312 = vmatpush1.msra.mxu0 0.0
    %313 = vmatprep.subr.mxu0 0.0
    %314 = vmatpush1.msra.mxu0 0.0
    %315 = vmatprep.subr.mxu0 0.0
    %316 = vmatpush1.msra.mxu0 0.0
    %317 = vmatprep.subr.mxu0 0.0
    %318 = vmatpush1.msra.mxu0 0.0
    %319 = vmatprep.subr.mxu0 0.0
    %320 = vmatpush1.msra.mxu0 0.0
    %321 = vmatprep.subr.mxu0 0.0
    %322 = vmatpush1.msra.mxu0 0.0
    %323 = vmatprep.subr.mxu0 0.0
    %324 = vmatpush1.msra.mxu0 0.0
    %325 = vmatprep.subr.mxu0 0.0
    %326 = vmatpush1.msra.mxu0 0.0
    %327 = vmatprep.subr.mxu0 0.0
    %328 = vmatpush1.msra.mxu0 0.0
    %329 = vmatprep.subr.mxu0 0.0
    %330 = vmatpush1.msra.mxu0 0.0
    %331 = vmatprep.subr.mxu0 0.0
    %332 = vmatpush1.msra.mxu0 0.0
    %333 = vmatprep.subr.mxu0 0.0
    %334 = vmatpush1.msra.mxu0 0.0
    %335 = vmatprep.subr.mxu0 0.0
    %336 = vmatpush1.msra.mxu0 0.0
    %337 = vmatprep.subr.mxu0 0.0
    %338 = vmatpush1.msra.mxu0 0.0
    %339 = vmatprep.subr.mxu0 0.0
    %340 = vmatpush1.msra.mxu0 0.0
    %341 = vmatprep.subr.mxu0 0.0
    %342 = vmatpush1.msra.mxu0 0.0
    %343 = vmatprep.subr.mxu0 0.0
    %344 = vmatpush1.msra.mxu0 0.0
    %345 = vmatprep.subr.mxu0 0.0
    %346 = vmatpush1.msra.mxu0 0.0
    %347 = vmatprep.subr.mxu0 0.0
    %348 = vmatpush1.msra.mxu0 0.0
    %349 = vmatprep.subr.mxu0 0.0
    %350 = vmatpush1.msra.mxu0 0.0
    %351 = vmatprep.subr.mxu0 0.0
    %352 = vmatpush1.msra.mxu0 0.0
    %353 = vmatprep.subr.mxu0 0.0
    %354 = vmatpush1.msra.mxu0 0.0
    %355 = vmatprep.subr.mxu0 0.0
    %356 = vmatpush1.msra.mxu0 0.0
    %357 = vmatprep.mubr.f32.mxu0 0.0
    %358 = vmatmul.mubr.f32.gmra.mrb[0].mxu0 %v291
    %v359 = vpop.f32.mrb[0].mxu0
    %v360 = vadd.f32 0.0, %v359
    %v361 = vpop.f32.mrb[0].mxu0
    %362 = vdwg.mxu0
    %v363 = vadd.f32 %v254, %v360
    %v364 = vmax.f32 %v363, 0.0
    %v366 = vsel %vm289, %v364, 0
    %368 = vmatprep.subr.mxu0 0.0
    %369 = vmatpush1.msra.mxu0 %v112
    %370 = vmatprep.subr.mxu0 0.0
    %371 = vmatpush1.msra.mxu0 %v113
    %372 = vmatprep.subr.mxu0 0.0
    %373 = vmatpush1.msra.mxu0 %v114
    %374 = vmatprep.subr.mxu0 0.0
    %375 = vmatpush1.msra.mxu0 %v115
    %376 = vmatprep.subr.mxu0 0.0
    %377 = vmatpush1.msra.mxu0 0.0
    %378 = vmatprep.subr.mxu0 0.0
    %379 = vmatpush1.msra.mxu0 0.0
    %380 = vmatprep.subr.mxu0 0.0
    %381 = vmatpush1.msra.mxu0 0.0
    %382 = vmatprep.subr.mxu0 0.0
    %383 = vmatpush1.msra.mxu0 0.0
    %384 = vmatprep.subr.mxu0 0.0
    %385 = vmatpush1.msra.mxu0 0.0
    %386 = vmatprep.subr.mxu0 0.0
    %387 = vmatpush1.msra.mxu0 0.0
    %388 = vmatprep.subr.mxu0 0.0
    %389 = vmatpush1.msra.mxu0 0.0
    %390 = vmatprep.subr.mxu0 0.0
    %391 = vmatpush1.msra.mxu0 0.0
    %392 = vmatprep.subr.mxu0 0.0
    %393 = vmatpush1.msra.mxu0 0.0
    %394 = vmatprep.subr.mxu0 0.0
    %395 = vmatpush1.msra.mxu0 0.0
    %396 = vmatprep.subr.mxu0 0.0
    %397 = vmatpush1.msra.mxu0 0.0
    %398 = vmatprep.subr.mxu0 0.0
    %399 = vmatpush1.msra.mxu0 0.0
    %400 = vmatprep.subr.mxu0 0.0
    %401 = vmatpush1.msra.mxu0 0.0
    %402 = vmatprep.subr.mxu0 0.0
    %403 = vmatpush1.msra.mxu0 0.0
    %404 = vmatprep.subr.mxu0 0.0
    %405 = vmatpush1.msra.mxu0 0.0
    %406 = vmatprep.subr.mxu0 0.0
    %407 = vmatpush1.msra.mxu0 0.0
    %408 = vmatprep.subr.mxu0 0.0
    %409 = vmatpush1.msra.mxu0 0.0
    %410 = vmatprep.subr.mxu0 0.0
    %411 = vmatpush1.msra.mxu0 0.0
    %412 = vmatprep.subr.mxu0 0.0
    %413 = vmatpush1.msra.mxu0 0.0
    %414 = vmatprep.subr.mxu0 0.0
    %415 = vmatpush1.msra.mxu0 0.0
    %416 = vmatprep.subr.mxu0 0.0
    %417 = vmatpush1.msra.mxu0 0.0
    %418 = vmatprep.subr.mxu0 0.0
    %419 = vmatpush1.msra.mxu0 0.0
    %420 = vmatprep.subr.mxu0 0.0
    %421 = vmatpush1.msra.mxu0 0.0
    %422 = vmatprep.subr.mxu0 0.0
    %423 = vmatpush1.msra.mxu0 0.0
    %424 = vmatprep.subr.mxu0 0.0
    %425 = vmatpush1.msra.mxu0 0.0
    %426 = vmatprep.subr.mxu0 0.0
    %427 = vmatpush1.msra.mxu0 0.0
    %428 = vmatprep.subr.mxu0 0.0
    %429 = vmatpush1.msra.mxu0 0.0
    %430 = vmatprep.subr.mxu0 0.0
    %431 = vmatpush1.msra.mxu0 0.0
    %432 = vmatprep.mubr.f32.mxu0 0.0
    %433 = vmatmul.mubr.f32.gmra.mrb[0].mxu0 %v366
    %v434 = vpop.f32.mrb[0].mxu0
    %v435 = vadd.f32 0.0, %v434
    %v436 = vpop.f32.mrb[0].mxu0
    %437 = vdwg.mxu0
    %v438 = vadd.f32 %v262, %v435
    %v439 = vmax.f32 %v438, 0.0
    %v441 = vsel %vm289, %v439, 0
    %443 = vmatprep.subr.mxu0 0.0
    %444 = vmatpush1.msra.mxu0 %v112
    %445 = vmatprep.subr.mxu0 0.0
    %446 = vmatpush1.msra.mxu0 %v113
    %447 = vmatprep.subr.mxu0 0.0
    %448 = vmatpush1.msra.mxu0 %v114
    %449 = vmatprep.subr.mxu0 0.0
    %450 = vmatpush1.msra.mxu0 %v115
    %451 = vmatprep.subr.mxu0 0.0
    %452 = vmatpush1.msra.mxu0 0.0
    %453 = vmatprep.subr.mxu0 0.0
    %454 = vmatpush1.msra.mxu0 0.0
    %455 = vmatprep.subr.mxu0 0.0
    %456 = vmatpush1.msra.mxu0 0.0
    %457 = vmatprep.subr.mxu0 0.0
    %458 = vmatpush1.msra.mxu0 0.0
    %459 = vmatprep.subr.mxu0 0.0
    %460 = vmatpush1.msra.mxu0 0.0
    %461 = vmatprep.subr.mxu0 0.0
    %462 = vmatpush1.msra.mxu0 0.0
    %463 = vmatprep.subr.mxu0 0.0
    %464 = vmatpush1.msra.mxu0 0.0
    %465 = vmatprep.subr.mxu0 0.0
    %466 = vmatpush1.msra.mxu0 0.0
    %467 = vmatprep.subr.mxu0 0.0
    %468 = vmatpush1.msra.mxu0 0.0
    %469 = vmatprep.subr.mxu0 0.0
    %470 = vmatpush1.msra.mxu0 0.0
    %471 = vmatprep.subr.mxu0 0.0
    %472 = vmatpush1.msra.mxu0 0.0
    %473 = vmatprep.subr.mxu0 0.0
    %474 = vmatpush1.msra.mxu0 0.0
    %475 = vmatprep.subr.mxu0 0.0
    %476 = vmatpush1.msra.mxu0 0.0
    %477 = vmatprep.subr.mxu0 0.0
    %478 = vmatpush1.msra.mxu0 0.0
    %479 = vmatprep.subr.mxu0 0.0
    %480 = vmatpush1.msra.mxu0 0.0
    %481 = vmatprep.subr.mxu0 0.0
    %482 = vmatpush1.msra.mxu0 0.0
    %483 = vmatprep.subr.mxu0 0.0
    %484 = vmatpush1.msra.mxu0 0.0
    %485 = vmatprep.subr.mxu0 0.0
    %486 = vmatpush1.msra.mxu0 0.0
    %487 = vmatprep.subr.mxu0 0.0
    %488 = vmatpush1.msra.mxu0 0.0
    %489 = vmatprep.subr.mxu0 0.0
    %490 = vmatpush1.msra.mxu0 0.0
    %491 = vmatprep.subr.mxu0 0.0
    %492 = vmatpush1.msra.mxu0 0.0
    %493 = vmatprep.subr.mxu0 0.0
    %494 = vmatpush1.msra.mxu0 0.0
    %495 = vmatprep.subr.mxu0 0.0
    %496 = vmatpush1.msra.mxu0 0.0
    %497 = vmatprep.subr.mxu0 0.0
    %498 = vmatpush1.msra.mxu0 0.0
    %499 = vmatprep.subr.mxu0 0.0
    %500 = vmatpush1.msra.mxu0 0.0
    %501 = vmatprep.subr.mxu0 0.0
    %502 = vmatpush1.msra.mxu0 0.0
    %503 = vmatprep.subr.mxu0 0.0
    %504 = vmatpush1.msra.mxu0 0.0
    %505 = vmatprep.subr.mxu0 0.0
    %506 = vmatpush1.msra.mxu0 0.0
    %507 = vmatprep.mubr.f32.mxu0 0.0
    %508 = vmatmul.mubr.f32.gmra.mrb[0].mxu0 %v441
    %v509 = vpop.f32.mrb[0].mxu0
    %v510 = vadd.f32 0.0, %v509
    %v511 = vpop.f32.mrb[0].mxu0
    %512 = vdwg.mxu0
    %v513 = vadd.f32 %v261, %v510
    %v514 = vmax.f32 %v513, 0.0
    %v516 = vsel %vm289, %v514, 0
    %518 = vmatprep.subr.mxu0 0.0
    %519 = vmatpush1.msra.mxu0 %v112
    %520 = vmatprep.subr.mxu0 0.0
    %521 = vmatpush1.msra.mxu0 %v113
    %522 = vmatprep.subr.mxu0 0.0
    %523 = vmatpush1.msra.mxu0 %v114
    %524 = vmatprep.subr.mxu0 0.0
    %525 = vmatpush1.msra.mxu0 %v115
    %526 = vmatprep.subr.mxu0 0.0
    %527 = vmatpush1.msra.mxu0 0.0
    %528 = vmatprep.subr.mxu0 0.0
    %529 = vmatpush1.msra.mxu0 0.0
    %530 = vmatprep.subr.mxu0 0.0
    %531 = vmatpush1.msra.mxu0 0.0
    %532 = vmatprep.subr.mxu0 0.0
    %533 = vmatpush1.msra.mxu0 0.0
    %534 = vmatprep.subr.mxu0 0.0
    %535 = vmatpush1.msra.mxu0 0.0
    %536 = vmatprep.subr.mxu0 0.0
    %537 = vmatpush1.msra.mxu0 0.0
    %538 = vmatprep.subr.mxu0 0.0
    %539 = vmatpush1.msra.mxu0 0.0
    %540 = vmatprep.subr.mxu0 0.0
    %541 = vmatpush1.msra.mxu0 0.0
    %542 = vmatprep.subr.mxu0 0.0
    %543 = vmatpush1.msra.mxu0 0.0
    %544 = vmatprep.subr.mxu0 0.0
    %545 = vmatpush1.msra.mxu0 0.0
    %546 = vmatprep.subr.mxu0 0.0
    %547 = vmatpush1.msra.mxu0 0.0
    %548 = vmatprep.subr.mxu0 0.0
    %549 = vmatpush1.msra.mxu0 0.0
    %550 = vmatprep.subr.mxu0 0.0
    %551 = vmatpush1.msra.mxu0 0.0
    %552 = vmatprep.subr.mxu0 0.0
    %553 = vmatpush1.msra.mxu0 0.0
    %554 = vmatprep.subr.mxu0 0.0
    %555 = vmatpush1.msra.mxu0 0.0
    %556 = vmatprep.subr.mxu0 0.0
    %557 = vmatpush1.msra.mxu0 0.0
    %558 = vmatprep.subr.mxu0 0.0
    %559 = vmatpush1.msra.mxu0 0.0
    %560 = vmatprep.subr.mxu0 0.0
    %561 = vmatpush1.msra.mxu0 0.0
    %562 = vmatprep.subr.mxu0 0.0
    %563 = vmatpush1.msra.mxu0 0.0
    %564 = vmatprep.subr.mxu0 0.0
    %565 = vmatpush1.msra.mxu0 0.0
    %566 = vmatprep.subr.mxu0 0.0
    %567 = vmatpush1.msra.mxu0 0.0
    %568 = vmatprep.subr.mxu0 0.0
    %569 = vmatpush1.msra.mxu0 0.0
    %570 = vmatprep.subr.mxu0 0.0
    %571 = vmatpush1.msra.mxu0 0.0
    %572 = vmatprep.subr.mxu0 0.0
    %573 = vmatpush1.msra.mxu0 0.0
    %574 = vmatprep.subr.mxu0 0.0
    %575 = vmatpush1.msra.mxu0 0.0
    %576 = vmatprep.subr.mxu0 0.0
    %577 = vmatpush1.msra.mxu0 0.0
    %578 = vmatprep.subr.mxu0 0.0
    %579 = vmatpush1.msra.mxu0 0.0
    %580 = vmatprep.subr.mxu0 0.0
    %581 = vmatpush1.msra.mxu0 0.0
    %582 = vmatprep.mubr.f32.mxu0 0.0
    %583 = vmatmul.mubr.f32.gmra.mrb[0].mxu0 %v516
    %v584 = vpop.f32.mrb[0].mxu0
    %v585 = vadd.f32 0.0, %v584
    %v586 = vpop.f32.mrb[0].mxu0
    %587 = vdwg.mxu0
    %v588 = vadd.f32 %v263, %v585
    %v589 = vmax.f32 %v588, 0.0
    %v591 = vsel %vm289, %v589, 0
    %593 = vmatprep.subr.mxu0 0.0
    %594 = vmatpush1.msra.mxu0 %v112
    %595 = vmatprep.subr.mxu0 0.0
    %596 = vmatpush1.msra.mxu0 %v113
    %597 = vmatprep.subr.mxu0 0.0
    %598 = vmatpush1.msra.mxu0 %v114
    %599 = vmatprep.subr.mxu0 0.0
    %600 = vmatpush1.msra.mxu0 %v115
    %601 = vmatprep.subr.mxu0 0.0
    %602 = vmatpush1.msra.mxu0 0.0
    %603 = vmatprep.subr.mxu0 0.0
    %604 = vmatpush1.msra.mxu0 0.0
    %605 = vmatprep.subr.mxu0 0.0
    %606 = vmatpush1.msra.mxu0 0.0
    %607 = vmatprep.subr.mxu0 0.0
    %608 = vmatpush1.msra.mxu0 0.0
    %609 = vmatprep.subr.mxu0 0.0
    %610 = vmatpush1.msra.mxu0 0.0
    %611 = vmatprep.subr.mxu0 0.0
    %612 = vmatpush1.msra.mxu0 0.0
    %613 = vmatprep.subr.mxu0 0.0
    %614 = vmatpush1.msra.mxu0 0.0
    %615 = vmatprep.subr.mxu0 0.0
    %616 = vmatpush1.msra.mxu0 0.0
    %617 = vmatprep.subr.mxu0 0.0
    %618 = vmatpush1.msra.mxu0 0.0
    %619 = vmatprep.subr.mxu0 0.0
    %620 = vmatpush1.msra.mxu0 0.0
    %621 = vmatprep.subr.mxu0 0.0
    %622 = vmatpush1.msra.mxu0 0.0
    %623 = vmatprep.subr.mxu0 0.0
    %624 = vmatpush1.msra.mxu0 0.0
    %625 = vmatprep.subr.mxu0 0.0
    %626 = vmatpush1.msra.mxu0 0.0
    %627 = vmatprep.subr.mxu0 0.0
    %628 = vmatpush1.msra.mxu0 0.0
    %629 = vmatprep.subr.mxu0 0.0
    %630 = vmatpush1.msra.mxu0 0.0
    %631 = vmatprep.subr.mxu0 0.0
    %632 = vmatpush1.msra.mxu0 0.0
    %633 = vmatprep.subr.mxu0 0.0
    %634 = vmatpush1.msra.mxu0 0.0
    %635 = vmatprep.subr.mxu0 0.0
    %636 = vmatpush1.msra.mxu0 0.0
    %637 = vmatprep.subr.mxu0 0.0
    %638 = vmatpush1.msra.mxu0 0.0
    %639 = vmatprep.subr.mxu0 0.0
    %640 = vmatpush1.msra.mxu0 0.0
    %641 = vmatprep.subr.mxu0 0.0
    %642 = vmatpush1.msra.mxu0 0.0
    %643 = vmatprep.subr.mxu0 0.0
    %644 = vmatpush1.msra.mxu0 0.0
    %645 = vmatprep.subr.mxu0 0.0
    %646 = vmatpush1.msra.mxu0 0.0
    %647 = vmatprep.subr.mxu0 0.0
    %648 = vmatpush1.msra.mxu0 0.0
    %649 = vmatprep.subr.mxu0 0.0
    %650 = vmatpush1.msra.mxu0 0.0
    %651 = vmatprep.subr.mxu0 0.0
    %652 = vmatpush1.msra.mxu0 0.0
    %653 = vmatprep.subr.mxu0 0.0
    %654 = vmatpush1.msra.mxu0 0.0
    %655 = vmatprep.subr.mxu0 0.0
    %656 = vmatpush1.msra.mxu0 0.0
    %657 = vmatprep.mubr.f32.mxu0 0.0
    %658 = vmatmul.mubr.f32.gmra.mrb[0].mxu0 %v591
    %v659 = vpop.f32.mrb[0].mxu0
    %v660 = vadd.f32 0.0, %v659
    %v661 = vpop.f32.mrb[0].mxu0
    %662 = vdwg.mxu0
    %v663 = vadd.f32 %v271, %v660
    %v664 = vmax.f32 %v663, 0.0
    %v666 = vsel %vm289, %v664, 0
    %668 = vmatprep.subr.mxu0 0.0
    %669 = vmatpush1.msra.mxu0 %v112
    %670 = vmatprep.subr.mxu0 0.0
    %671 = vmatpush1.msra.mxu0 %v113
    %672 = vmatprep.subr.mxu0 0.0
    %673 = vmatpush1.msra.mxu0 %v114
    %674 = vmatprep.subr.mxu0 0.0
    %675 = vmatpush1.msra.mxu0 %v115
    %676 = vmatprep.subr.mxu0 0.0
    %677 = vmatpush1.msra.mxu0 0.0
    %678 = vmatprep.subr.mxu0 0.0
    %679 = vmatpush1.msra.mxu0 0.0
    %680 = vmatprep.subr.mxu0 0.0
    %681 = vmatpush1.msra.mxu0 0.0
    %682 = vmatprep.subr.mxu0 0.0
    %683 = vmatpush1.msra.mxu0 0.0
    %684 = vmatprep.subr.mxu0 0.0
    %685 = vmatpush1.msra.mxu0 0.0
    %686 = vmatprep.subr.mxu0 0.0
    %687 = vmatpush1.msra.mxu0 0.0
    %688 = vmatprep.subr.mxu0 0.0
    %689 = vmatpush1.msra.mxu0 0.0
    %690 = vmatprep.subr.mxu0 0.0
    %691 = vmatpush1.msra.mxu0 0.0
    %692 = vmatprep.subr.mxu0 0.0
    %693 = vmatpush1.msra.mxu0 0.0
    %694 = vmatprep.subr.mxu0 0.0
    %695 = vmatpush1.msra.mxu0 0.0
    %696 = vmatprep.subr.mxu0 0.0
    %697 = vmatpush1.msra.mxu0 0.0
    %698 = vmatprep.subr.mxu0 0.0
    %699 = vmatpush1.msra.mxu0 0.0
    %700 = vmatprep.subr.mxu0 0.0
    %701 = vmatpush1.msra.mxu0 0.0
    %702 = vmatprep.subr.mxu0 0.0
    %703 = vmatpush1.msra.mxu0 0.0
    %704 = vmatprep.subr.mxu0 0.0
    %705 = vmatpush1.msra.mxu0 0.0
    %706 = vmatprep.subr.mxu0 0.0
    %707 = vmatpush1.msra.mxu0 0.0
    %708 = vmatprep.subr.mxu0 0.0
    %709 = vmatpush1.msra.mxu0 0.0
    %710 = vmatprep.subr.mxu0 0.0
    %711 = vmatpush1.msra.mxu0 0.0
    %712 = vmatprep.subr.mxu0 0.0
    %713 = vmatpush1.msra.mxu0 0.0
    %714 = vmatprep.subr.mxu0 0.0
    %715 = vmatpush1.msra.mxu0 0.0
    %716 = vmatprep.subr.mxu0 0.0
    %717 = vmatpush1.msra.mxu0 0.0
    %718 = vmatprep.subr.mxu0 0.0
    %719 = vmatpush1.msra.mxu0 0.0
    %720 = vmatprep.subr.mxu0 0.0
    %721 = vmatpush1.msra.mxu0 0.0
    %722 = vmatprep.subr.mxu0 0.0
    %723 = vmatpush1.msra.mxu0 0.0
    %724 = vmatprep.subr.mxu0 0.0
    %725 = vmatpush1.msra.mxu0 0.0
    %726 = vmatprep.subr.mxu0 0.0
    %727 = vmatpush1.msra.mxu0 0.0
    %728 = vmatprep.subr.mxu0 0.0
    %729 = vmatpush1.msra.mxu0 0.0
    %730 = vmatprep.subr.mxu0 0.0
    %731 = vmatpush1.msra.mxu0 0.0
    %732 = vmatprep.mubr.f32.mxu0 0.0
    %733 = vmatmul.mubr.f32.gmra.mrb[0].mxu0 %v666
    %v734 = vpop.f32.mrb[0].mxu0
    %v735 = vadd.f32 0.0, %v734
    %v736 = vpop.f32.mrb[0].mxu0
    %737 = vdwg.mxu0
    %v738 = vadd.f32 %v279, %v735
    %v739 = vmax.f32 %v738, 0.0
    %v741 = vsel %vm289, %v739, 0
    %743 = vmatprep.subr.mxu0 0.0
    %744 = vmatpush1.msra.mxu0 %v112
    %745 = vmatprep.subr.mxu0 0.0
    %746 = vmatpush1.msra.mxu0 %v113
    %747 = vmatprep.subr.mxu0 0.0
    %748 = vmatpush1.msra.mxu0 %v114
    %749 = vmatprep.subr.mxu0 0.0
    %750 = vmatpush1.msra.mxu0 %v115
    %751 = vmatprep.subr.mxu0 0.0
    %752 = vmatpush1.msra.mxu0 0.0
    %753 = vmatprep.subr.mxu0 0.0
    %754 = vmatpush1.msra.mxu0 0.0
    %755 = vmatprep.subr.mxu0 0.0
    %756 = vmatpush1.msra.mxu0 0.0
    %757 = vmatprep.subr.mxu0 0.0
    %758 = vmatpush1.msra.mxu0 0.0
    %759 = vmatprep.subr.mxu0 0.0
    %760 = vmatpush1.msra.mxu0 0.0
    %761 = vmatprep.subr.mxu0 0.0
    %762 = vmatpush1.msra.mxu0 0.0
    %763 = vmatprep.subr.mxu0 0.0
    %764 = vmatpush1.msra.mxu0 0.0
    %765 = vmatprep.subr.mxu0 0.0
    %766 = vmatpush1.msra.mxu0 0.0
    %767 = vmatprep.subr.mxu0 0.0
    %768 = vmatpush1.msra.mxu0 0.0
    %769 = vmatprep.subr.mxu0 0.0
    %770 = vmatpush1.msra.mxu0 0.0
    %771 = vmatprep.subr.mxu0 0.0
    %772 = vmatpush1.msra.mxu0 0.0
    %773 = vmatprep.subr.mxu0 0.0
    %774 = vmatpush1.msra.mxu0 0.0
    %775 = vmatprep.subr.mxu0 0.0
    %776 = vmatpush1.msra.mxu0 0.0
    %777 = vmatprep.subr.mxu0 0.0
    %778 = vmatpush1.msra.mxu0 0.0
    %779 = vmatprep.subr.mxu0 0.0
    %780 = vmatpush1.msra.mxu0 0.0
    %781 = vmatprep.subr.mxu0 0.0
    %782 = vmatpush1.msra.mxu0 0.0
    %783 = vmatprep.subr.mxu0 0.0
    %784 = vmatpush1.msra.mxu0 0.0
    %785 = vmatprep.subr.mxu0 0.0
    %786 = vmatpush1.msra.mxu0 0.0
    %787 = vmatprep.subr.mxu0 0.0
    %788 = vmatpush1.msra.mxu0 0.0
    %789 = vmatprep.subr.mxu0 0.0
    %790 = vmatpush1.msra.mxu0 0.0
    %791 = vmatprep.subr.mxu0 0.0
    %792 = vmatpush1.msra.mxu0 0.0
    %793 = vmatprep.subr.mxu0 0.0
    %794 = vmatpush1.msra.mxu0 0.0
    %795 = vmatprep.subr.mxu0 0.0
    %796 = vmatpush1.msra.mxu0 0.0
    %797 = vmatprep.subr.mxu0 0.0
    %798 = vmatpush1.msra.mxu0 0.0
    %799 = vmatprep.subr.mxu0 0.0
    %800 = vmatpush1.msra.mxu0 0.0
    %801 = vmatprep.subr.mxu0 0.0
    %802 = vmatpush1.msra.mxu0 0.0
    %803 = vmatprep.subr.mxu0 0.0
    %804 = vmatpush1.msra.mxu0 0.0
    %805 = vmatprep.subr.mxu0 0.0
    %806 = vmatpush1.msra.mxu0 0.0
    %807 = vmatprep.mubr.f32.mxu0 0.0
    %808 = vmatmul.mubr.f32.gmra.mrb[0].mxu0 %v741
    %v809 = vpop.f32.mrb[0].mxu0
    %v810 = vadd.f32 0.0, %v809
    %v811 = vpop.f32.mrb[0].mxu0
    %812 = vdwg.mxu0
    %v813 = vadd.f32 %v278, %v810
    %v814 = vmax.f32 %v813, 0.0
    %v816 = vsel %vm289, %v814, 0
    %818 = vmatprep.subr.mxu0 0.0
    %819 = vmatpush1.msra.mxu0 %v112
    %820 = vmatprep.subr.mxu0 0.0
    %821 = vmatpush1.msra.mxu0 %v113
    %822 = vmatprep.subr.mxu0 0.0
    %823 = vmatpush1.msra.mxu0 %v114
    %824 = vmatprep.subr.mxu0 0.0
    %825 = vmatpush1.msra.mxu0 %v115
    %826 = vmatprep.subr.mxu0 0.0
    %827 = vmatpush1.msra.mxu0 0.0
    %828 = vmatprep.subr.mxu0 0.0
    %829 = vmatpush1.msra.mxu0 0.0
    %830 = vmatprep.subr.mxu0 0.0
    %831 = vmatpush1.msra.mxu0 0.0
    %832 = vmatprep.subr.mxu0 0.0
    %833 = vmatpush1.msra.mxu0 0.0
    %834 = vmatprep.subr.mxu0 0.0
    %835 = vmatpush1.msra.mxu0 0.0
    %836 = vmatprep.subr.mxu0 0.0
    %837 = vmatpush1.msra.mxu0 0.0
    %838 = vmatprep.subr.mxu0 0.0
    %839 = vmatpush1.msra.mxu0 0.0
    %840 = vmatprep.subr.mxu0 0.0
    %841 = vmatpush1.msra.mxu0 0.0
    %842 = vmatprep.subr.mxu0 0.0
    %843 = vmatpush1.msra.mxu0 0.0
    %844 = vmatprep.subr.mxu0 0.0
    %845 = vmatpush1.msra.mxu0 0.0
    %846 = vmatprep.subr.mxu0 0.0
    %847 = vmatpush1.msra.mxu0 0.0
    %848 = vmatprep.subr.mxu0 0.0
    %849 = vmatpush1.msra.mxu0 0.0
    %850 = vmatprep.subr.mxu0 0.0
    %851 = vmatpush1.msra.mxu0 0.0
    %852 = vmatprep.subr.mxu0 0.0
    %853 = vmatpush1.msra.mxu0 0.0
    %854 = vmatprep.subr.mxu0 0.0
    %855 = vmatpush1.msra.mxu0 0.0
    %856 = vmatprep.subr.mxu0 0.0
    %857 = vmatpush1.msra.mxu0 0.0
    %858 = vmatprep.subr.mxu0 0.0
    %859 = vmatpush1.msra.mxu0 0.0
    %860 = vmatprep.subr.mxu0 0.0
    %861 = vmatpush1.msra.mxu0 0.0
    %862 = vmatprep.subr.mxu0 0.0
    %863 = vmatpush1.msra.mxu0 0.0
    %864 = vmatprep.subr.mxu0 0.0
    %865 = vmatpush1.msra.mxu0 0.0
    %866 = vmatprep.subr.mxu0 0.0
    %867 = vmatpush1.msra.mxu0 0.0
    %868 = vmatprep.subr.mxu0 0.0
    %869 = vmatpush1.msra.mxu0 0.0
    %870 = vmatprep.subr.mxu0 0.0
    %871 = vmatpush1.msra.mxu0 0.0
    %872 = vmatprep.subr.mxu0 0.0
    %873 = vmatpush1.msra.mxu0 0.0
    %874 = vmatprep.subr.mxu0 0.0
    %875 = vmatpush1.msra.mxu0 0.0
    %876 = vmatprep.subr.mxu0 0.0
    %877 = vmatpush1.msra.mxu0 0.0
    %878 = vmatprep.subr.mxu0 0.0
    %879 = vmatpush1.msra.mxu0 0.0
    %880 = vmatprep.subr.mxu0 0.0
    %881 = vmatpush1.msra.mxu0 0.0
    %882 = vmatprep.mubr.f32.mxu0 0.0
    %883 = vmatmul.mubr.f32.gmra.mrb[0].mxu0 %v816
    %v884 = vpop.f32.mrb[0].mxu0
    %v885 = vadd.f32 0.0, %v884
    %v886 = vpop.f32.mrb[0].mxu0
    %887 = vdwg.mxu0
    %v888 = vadd.f32 %v280, %v885
    %v889 = vmax.f32 %v888, 0.0
    %v890 = vld [vmem:[#allocation8] sm:$0xff]
    %v891 = vld [vmem:[#allocation8 + $0x8] sm:$0xff]
    %v892 = vld [vmem:[#allocation8 + $0x10] sm:$0xff]
    %v893 = vld [vmem:[#allocation8 + $0x18] sm:$0xff]
    %v894 = vld [vmem:[#allocation10] sm:$0xff]
    %v895 = vld [vmem:[#allocation10 + $0x8] sm:$0xff]
    %v896 = vld [vmem:[#allocation10 + $0x10] sm:$0xff]
    %v897 = vld [vmem:[#allocation10 + $0x18] sm:$0xff]
    %v898 = vld [vmem:[%s6] sm:$0x1]
    %v900 = vlaneseq
    %v901 = vshrl.u32 %v900, 7
    %v902 = vsub.s32 0, %v901
    %v903 = vrot.slane %v898, %v902
    %v906 = vcombine.low %v364, %v439
    %v907 = vcombine.low %v514, %v589
    %v909 = vunpack.c.l.s4 1983009808
    %v910 = vunpack.c.0.s8 %v909
    %v911 = vlaneseq
    %v912 = vshrl.u32 %v911, 7
    %v913 = vsub.s32 %v910, %v912
    %v914 = vrot.slane %v906, %v913
    %v916 = vunpack.c.l.s4 1983009808
    %v917 = vunpack.c.0.s8 %v916
    %v918 = vlaneseq
    %v919 = vshrl.u32 %v918, 7
    %v920 = vsub.s32 %v917, %v919
    %v921 = vrot.slane %v907, %v920
    %v922 = vcombine.low %v914, %v921
    %v923 = vcombine.low %v664, %v739
    %v924 = vcombine.low %v814, %v889
    %v926 = vunpack.c.l.s4 1983009808
    %v927 = vunpack.c.0.s8 %v926
    %v928 = vlaneseq
    %v929 = vshrl.u32 %v928, 7
    %v930 = vsub.s32 %v927, %v929
    %v931 = vrot.slane %v923, %v930
    %v933 = vunpack.c.l.s4 1983009808
    %v934 = vunpack.c.0.s8 %v933
    %v935 = vlaneseq
    %v936 = vshrl.u32 %v935, 7
    %v937 = vsub.s32 %v934, %v936
    %v938 = vrot.slane %v924, %v937
    %v939 = vcombine.low %v931, %v938
    %v940 = vsel %vm289, %v922, 0
    %v942 = vsel %vm289, %v939, 0
    %944 = vmatprep.subr.mxu0 0.0
    %945 = vmatpush1.msra.mxu0 %v890
    %946 = vmatprep.subr.mxu0 0.0
    %947 = vmatpush1.msra.mxu0 %v891
    %948 = vmatprep.subr.mxu0 0.0
    %949 = vmatpush1.msra.mxu0 %v892
    %950 = vmatprep.subr.mxu0 0.0
    %951 = vmatpush1.msra.mxu0 %v893
    %952 = vmatprep.subr.mxu0 0.0
    %953 = vmatpush1.msra.mxu0 0.0
    %954 = vmatprep.subr.mxu0 0.0
    %955 = vmatpush1.msra.mxu0 0.0
    %956 = vmatprep.subr.mxu0 0.0
    %957 = vmatpush1.msra.mxu0 0.0
    %958 = vmatprep.subr.mxu0 0.0
    %959 = vmatpush1.msra.mxu0 0.0
    %960 = vmatprep.subr.mxu0 0.0
    %961 = vmatpush1.msra.mxu0 0.0
    %962 = vmatprep.subr.mxu0 0.0
    %963 = vmatpush1.msra.mxu0 0.0
    %964 = vmatprep.subr.mxu0 0.0
    %965 = vmatpush1.msra.mxu0 0.0
    %966 = vmatprep.subr.mxu0 0.0
    %967 = vmatpush1.msra.mxu0 0.0
    %968 = vmatprep.subr.mxu0 0.0
    %969 = vmatpush1.msra.mxu0 0.0
    %970 = vmatprep.subr.mxu0 0.0
    %971 = vmatpush1.msra.mxu0 0.0
    %972 = vmatprep.subr.mxu0 0.0
    %973 = vmatpush1.msra.mxu0 0.0
    %974 = vmatprep.subr.mxu0 0.0
    %975 = vmatpush1.msra.mxu0 0.0
    %976 = vmatprep.subr.mxu0 0.0
    %977 = vmatpush1.msra.mxu0 0.0
    %978 = vmatprep.subr.mxu0 0.0
    %979 = vmatpush1.msra.mxu0 0.0
    %980 = vmatprep.subr.mxu0 0.0
    %981 = vmatpush1.msra.mxu0 0.0
    %982 = vmatprep.subr.mxu0 0.0
    %983 = vmatpush1.msra.mxu0 0.0
    %984 = vmatprep.subr.mxu0 0.0
    %985 = vmatpush1.msra.mxu0 0.0
    %986 = vmatprep.subr.mxu0 0.0
    %987 = vmatpush1.msra.mxu0 0.0
    %988 = vmatprep.subr.mxu0 0.0
    %989 = vmatpush1.msra.mxu0 0.0
    %990 = vmatprep.subr.mxu0 0.0
    %991 = vmatpush1.msra.mxu0 0.0
    %992 = vmatprep.subr.mxu0 0.0
    %993 = vmatpush1.msra.mxu0 0.0
    %994 = vmatprep.subr.mxu0 0.0
    %995 = vmatpush1.msra.mxu0 0.0
    %996 = vmatprep.subr.mxu0 0.0
    %997 = vmatpush1.msra.mxu0 0.0
    %998 = vmatprep.subr.mxu0 0.0
    %999 = vmatpush1.msra.mxu0 0.0
    %1000 = vmatprep.subr.mxu0 0.0
    %1001 = vmatpush1.msra.mxu0 0.0
    %1002 = vmatprep.subr.mxu0 0.0
    %1003 = vmatpush1.msra.mxu0 0.0
    %1004 = vmatprep.subr.mxu0 0.0
    %1005 = vmatpush1.msra.mxu0 0.0
    %1006 = vmatprep.subr.mxu0 0.0
    %1007 = vmatpush1.msra.mxu0 0.0
    %1008 = vmatprep.mubr.f32.mxu0 0.0
    %1009 = vmatmul.mubr.f32.gmra.mrb[0].mxu0 %v940
    %v1010 = vpop.f32.mrb[0].mxu0
    %v1011 = vadd.f32 %v903, %v1010
    %v1012 = vpop.f32.mrb[0].mxu0
    %1013 = vmatprep.mubr.f32.mxu0 0.0
    %1014 = vmatmul.mubr.f32.gmra.mrb[0].mxu0 %v942
    %v1015 = vpop.f32.mrb[0].mxu0
    %v1016 = vadd.f32 %v903, %v1015
    %v1017 = vpop.f32.mrb[0].mxu0
    %1018 = vdwg.mxu0
    %v1021 = vcombine.high %v1011, %v1011
    %v1023 = vunpack.c.l.s4 1983009808
    %v1024 = vunpack.c.0.s8 %v1023
    %v1025 = vlaneseq
    %v1026 = vshrl.u32 %v1025, 7
    %v1027 = vsub.s32 %v1024, %v1026
    %v1028 = vrot.slane %v1011, %v1027
    %v1030 = vunpack.c.l.s4 1983009808
    %v1031 = vunpack.c.0.s8 %v1030
    %v1032 = vlaneseq
    %v1033 = vshrl.u32 %v1032, 7
    %v1034 = vsub.s32 %v1031, %v1033
    %v1035 = vrot.slane %v1021, %v1034
    %v1036 = vcombine.high %v1028, %v1028
    %v1037 = vcombine.high %v1035, %v1035
    %v1038 = vcombine.high %v1016, %v1016
    %v1040 = vunpack.c.l.s4 1983009808
    %v1041 = vunpack.c.0.s8 %v1040
    %v1042 = vlaneseq
    %v1043 = vshrl.u32 %v1042, 7
    %v1044 = vsub.s32 %v1041, %v1043
    %v1045 = vrot.slane %v1016, %v1044
    %v1047 = vunpack.c.l.s4 1983009808
    %v1048 = vunpack.c.0.s8 %v1047
    %v1049 = vlaneseq
    %v1050 = vshrl.u32 %v1049, 7
    %v1051 = vsub.s32 %v1048, %v1050
    %v1052 = vrot.slane %v1038, %v1051
    %v1053 = vcombine.high %v1045, %v1045
    %v1054 = vcombine.high %v1052, %v1052
    %1063 = vmatprep.subr.mxu0 0.0
    %1064 = vmatpush1.msra.mxu0 %v894
    %1065 = vmatprep.subr.mxu0 0.0
    %1066 = vmatpush1.msra.mxu0 %v895
    %1067 = vmatprep.subr.mxu0 0.0
    %1068 = vmatpush1.msra.mxu0 %v896
    %1069 = vmatprep.subr.mxu0 0.0
    %1070 = vmatpush1.msra.mxu0 %v897
    %1071 = vmatprep.subr.mxu0 0.0
    %1072 = vmatpush1.msra.mxu0 0.0
    %1073 = vmatprep.subr.mxu0 0.0
    %1074 = vmatpush1.msra.mxu0 0.0
    %1075 = vmatprep.subr.mxu0 0.0
    %1076 = vmatpush1.msra.mxu0 0.0
    %1077 = vmatprep.subr.mxu0 0.0
    %1078 = vmatpush1.msra.mxu0 0.0
    %1079 = vmatprep.subr.mxu0 0.0
    %1080 = vmatpush1.msra.mxu0 0.0
    %1081 = vmatprep.subr.mxu0 0.0
    %1082 = vmatpush1.msra.mxu0 0.0
    %1083 = vmatprep.subr.mxu0 0.0
    %1084 = vmatpush1.msra.mxu0 0.0
    %1085 = vmatprep.subr.mxu0 0.0
    %1086 = vmatpush1.msra.mxu0 0.0
    %1087 = vmatprep.subr.mxu0 0.0
    %1088 = vmatpush1.msra.mxu0 0.0
    %1089 = vmatprep.subr.mxu0 0.0
    %1090 = vmatpush1.msra.mxu0 0.0
    %1091 = vmatprep.subr.mxu0 0.0
    %1092 = vmatpush1.msra.mxu0 0.0
    %1093 = vmatprep.subr.mxu0 0.0
    %1094 = vmatpush1.msra.mxu0 0.0
    %1095 = vmatprep.subr.mxu0 0.0
    %1096 = vmatpush1.msra.mxu0 0.0
    %1097 = vmatprep.subr.mxu0 0.0
    %1098 = vmatpush1.msra.mxu0 0.0
    %1099 = vmatprep.subr.mxu0 0.0
    %1100 = vmatpush1.msra.mxu0 0.0
    %1101 = vmatprep.subr.mxu0 0.0
    %1102 = vmatpush1.msra.mxu0 0.0
    %1103 = vmatprep.subr.mxu0 0.0
    %1104 = vmatpush1.msra.mxu0 0.0
    %1105 = vmatprep.subr.mxu0 0.0
    %1106 = vmatpush1.msra.mxu0 0.0
    %1107 = vmatprep.subr.mxu0 0.0
    %1108 = vmatpush1.msra.mxu0 0.0
    %1109 = vmatprep.subr.mxu0 0.0
    %1110 = vmatpush1.msra.mxu0 0.0
    %1111 = vmatprep.subr.mxu0 0.0
    %1112 = vmatpush1.msra.mxu0 0.0
    %1113 = vmatprep.subr.mxu0 0.0
    %1114 = vmatpush1.msra.mxu0 0.0
    %1115 = vmatprep.subr.mxu0 0.0
    %1116 = vmatpush1.msra.mxu0 0.0
    %1117 = vmatprep.subr.mxu0 0.0
    %1118 = vmatpush1.msra.mxu0 0.0
    %1119 = vmatprep.subr.mxu0 0.0
    %1120 = vmatpush1.msra.mxu0 0.0
    %1121 = vmatprep.subr.mxu0 0.0
    %1122 = vmatpush1.msra.mxu0 0.0
    %1123 = vmatprep.subr.mxu0 0.0
    %1124 = vmatpush1.msra.mxu0 0.0
    %1125 = vmatprep.subr.mxu0 0.0
    %1126 = vmatpush1.msra.mxu0 0.0
    %1127 = vmatprep.mubr.f32.mxu0 0.0
    %1128 = vmatmul.mubr.f32.gmra.mrb[0].mxu0 %v291
    %v1129 = vpop.f32.mrb[0].mxu0
    %v1130 = vadd.f32 0.0, %v1129
    %v1131 = vpop.f32.mrb[0].mxu0
    %1132 = vdwg.mxu0
    %v1133 = vadd.f32 %v1028, %v1130
    %v1134 = vmax.f32 %v1133, 0.0
    %v1136 = vsel %vm289, %v1134, 0
    %1138 = vmatprep.subr.mxu0 0.0
    %1139 = vmatpush1.msra.mxu0 %v894
    %1140 = vmatprep.subr.mxu0 0.0
    %1141 = vmatpush1.msra.mxu0 %v895
    %1142 = vmatprep.subr.mxu0 0.0
    %1143 = vmatpush1.msra.mxu0 %v896
    %1144 = vmatprep.subr.mxu0 0.0
    %1145 = vmatpush1.msra.mxu0 %v897
    %1146 = vmatprep.subr.mxu0 0.0
    %1147 = vmatpush1.msra.mxu0 0.0
    %1148 = vmatprep.subr.mxu0 0.0
    %1149 = vmatpush1.msra.mxu0 0.0
    %1150 = vmatprep.subr.mxu0 0.0
    %1151 = vmatpush1.msra.mxu0 0.0
    %1152 = vmatprep.subr.mxu0 0.0
    %1153 = vmatpush1.msra.mxu0 0.0
    %1154 = vmatprep.subr.mxu0 0.0
    %1155 = vmatpush1.msra.mxu0 0.0
    %1156 = vmatprep.subr.mxu0 0.0
    %1157 = vmatpush1.msra.mxu0 0.0
    %1158 = vmatprep.subr.mxu0 0.0
    %1159 = vmatpush1.msra.mxu0 0.0
    %1160 = vmatprep.subr.mxu0 0.0
    %1161 = vmatpush1.msra.mxu0 0.0
    %1162 = vmatprep.subr.mxu0 0.0
    %1163 = vmatpush1.msra.mxu0 0.0
    %1164 = vmatprep.subr.mxu0 0.0
    %1165 = vmatpush1.msra.mxu0 0.0
    %1166 = vmatprep.subr.mxu0 0.0
    %1167 = vmatpush1.msra.mxu0 0.0
    %1168 = vmatprep.subr.mxu0 0.0
    %1169 = vmatpush1.msra.mxu0 0.0
    %1170 = vmatprep.subr.mxu0 0.0
    %1171 = vmatpush1.msra.mxu0 0.0
    %1172 = vmatprep.subr.mxu0 0.0
    %1173 = vmatpush1.msra.mxu0 0.0
    %1174 = vmatprep.subr.mxu0 0.0
    %1175 = vmatpush1.msra.mxu0 0.0
    %1176 = vmatprep.subr.mxu0 0.0
    %1177 = vmatpush1.msra.mxu0 0.0
    %1178 = vmatprep.subr.mxu0 0.0
    %1179 = vmatpush1.msra.mxu0 0.0
    %1180 = vmatprep.subr.mxu0 0.0
    %1181 = vmatpush1.msra.mxu0 0.0
    %1182 = vmatprep.subr.mxu0 0.0
    %1183 = vmatpush1.msra.mxu0 0.0
    %1184 = vmatprep.subr.mxu0 0.0
    %1185 = vmatpush1.msra.mxu0 0.0
    %1186 = vmatprep.subr.mxu0 0.0
    %1187 = vmatpush1.msra.mxu0 0.0
    %1188 = vmatprep.subr.mxu0 0.0
    %1189 = vmatpush1.msra.mxu0 0.0
    %1190 = vmatprep.subr.mxu0 0.0
    %1191 = vmatpush1.msra.mxu0 0.0
    %1192 = vmatprep.subr.mxu0 0.0
    %1193 = vmatpush1.msra.mxu0 0.0
    %1194 = vmatprep.subr.mxu0 0.0
    %1195 = vmatpush1.msra.mxu0 0.0
    %1196 = vmatprep.subr.mxu0 0.0
    %1197 = vmatpush1.msra.mxu0 0.0
    %1198 = vmatprep.subr.mxu0 0.0
    %1199 = vmatpush1.msra.mxu0 0.0
    %1200 = vmatprep.subr.mxu0 0.0
    %1201 = vmatpush1.msra.mxu0 0.0
    %1202 = vmatprep.mubr.f32.mxu0 0.0
    %1203 = vmatmul.mubr.f32.gmra.mrb[0].mxu0 %v1136
    %v1204 = vpop.f32.mrb[0].mxu0
    %v1205 = vadd.f32 0.0, %v1204
    %v1206 = vpop.f32.mrb[0].mxu0
    %1207 = vdwg.mxu0
    %v1208 = vadd.f32 %v1036, %v1205
    %v1209 = vmax.f32 %v1208, 0.0
    %v1211 = vsel %vm289, %v1209, 0
    %1213 = vmatprep.subr.mxu0 0.0
    %1214 = vmatpush1.msra.mxu0 %v894
    %1215 = vmatprep.subr.mxu0 0.0
    %1216 = vmatpush1.msra.mxu0 %v895
    %1217 = vmatprep.subr.mxu0 0.0
    %1218 = vmatpush1.msra.mxu0 %v896
    %1219 = vmatprep.subr.mxu0 0.0
    %1220 = vmatpush1.msra.mxu0 %v897
    %1221 = vmatprep.subr.mxu0 0.0
    %1222 = vmatpush1.msra.mxu0 0.0
    %1223 = vmatprep.subr.mxu0 0.0
    %1224 = vmatpush1.msra.mxu0 0.0
    %1225 = vmatprep.subr.mxu0 0.0
    %1226 = vmatpush1.msra.mxu0 0.0
    %1227 = vmatprep.subr.mxu0 0.0
    %1228 = vmatpush1.msra.mxu0 0.0
    %1229 = vmatprep.subr.mxu0 0.0
    %1230 = vmatpush1.msra.mxu0 0.0
    %1231 = vmatprep.subr.mxu0 0.0
    %1232 = vmatpush1.msra.mxu0 0.0
    %1233 = vmatprep.subr.mxu0 0.0
    %1234 = vmatpush1.msra.mxu0 0.0
    %1235 = vmatprep.subr.mxu0 0.0
    %1236 = vmatpush1.msra.mxu0 0.0
    %1237 = vmatprep.subr.mxu0 0.0
    %1238 = vmatpush1.msra.mxu0 0.0
    %1239 = vmatprep.subr.mxu0 0.0
    %1240 = vmatpush1.msra.mxu0 0.0
    %1241 = vmatprep.subr.mxu0 0.0
    %1242 = vmatpush1.msra.mxu0 0.0
    %1243 = vmatprep.subr.mxu0 0.0
    %1244 = vmatpush1.msra.mxu0 0.0
    %1245 = vmatprep.subr.mxu0 0.0
    %1246 = vmatpush1.msra.mxu0 0.0
    %1247 = vmatprep.subr.mxu0 0.0
    %1248 = vmatpush1.msra.mxu0 0.0
    %1249 = vmatprep.subr.mxu0 0.0
    %1250 = vmatpush1.msra.mxu0 0.0
    %1251 = vmatprep.subr.mxu0 0.0
    %1252 = vmatpush1.msra.mxu0 0.0
    %1253 = vmatprep.subr.mxu0 0.0
    %1254 = vmatpush1.msra.mxu0 0.0
    %1255 = vmatprep.subr.mxu0 0.0
    %1256 = vmatpush1.msra.mxu0 0.0
    %1257 = vmatprep.subr.mxu0 0.0
    %1258 = vmatpush1.msra.mxu0 0.0
    %1259 = vmatprep.subr.mxu0 0.0
    %1260 = vmatpush1.msra.mxu0 0.0
    %1261 = vmatprep.subr.mxu0 0.0
    %1262 = vmatpush1.msra.mxu0 0.0
    %1263 = vmatprep.subr.mxu0 0.0
    %1264 = vmatpush1.msra.mxu0 0.0
    %1265 = vmatprep.subr.mxu0 0.0
    %1266 = vmatpush1.msra.mxu0 0.0
    %1267 = vmatprep.subr.mxu0 0.0
    %1268 = vmatpush1.msra.mxu0 0.0
    %1269 = vmatprep.subr.mxu0 0.0
    %1270 = vmatpush1.msra.mxu0 0.0
    %1271 = vmatprep.subr.mxu0 0.0
    %1272 = vmatpush1.msra.mxu0 0.0
    %1273 = vmatprep.subr.mxu0 0.0
    %1274 = vmatpush1.msra.mxu0 0.0
    %1275 = vmatprep.subr.mxu0 0.0
    %1276 = vmatpush1.msra.mxu0 0.0
    %1277 = vmatprep.mubr.f32.mxu0 0.0
    %1278 = vmatmul.mubr.f32.gmra.mrb[0].mxu0 %v1211
    %v1279 = vpop.f32.mrb[0].mxu0
    %v1280 = vadd.f32 0.0, %v1279
    %v1281 = vpop.f32.mrb[0].mxu0
    %1282 = vdwg.mxu0
    %v1283 = vadd.f32 %v1035, %v1280
    %v1284 = vmax.f32 %v1283, 0.0
    %v1286 = vsel %vm289, %v1284, 0
    %1288 = vmatprep.subr.mxu0 0.0
    %1289 = vmatpush1.msra.mxu0 %v894
    %1290 = vmatprep.subr.mxu0 0.0
    %1291 = vmatpush1.msra.mxu0 %v895
    %1292 = vmatprep.subr.mxu0 0.0
    %1293 = vmatpush1.msra.mxu0 %v896
    %1294 = vmatprep.subr.mxu0 0.0
    %1295 = vmatpush1.msra.mxu0 %v897
    %1296 = vmatprep.subr.mxu0 0.0
    %1297 = vmatpush1.msra.mxu0 0.0
    %1298 = vmatprep.subr.mxu0 0.0
    %1299 = vmatpush1.msra.mxu0 0.0
    %1300 = vmatprep.subr.mxu0 0.0
    %1301 = vmatpush1.msra.mxu0 0.0
    %1302 = vmatprep.subr.mxu0 0.0
    %1303 = vmatpush1.msra.mxu0 0.0
    %1304 = vmatprep.subr.mxu0 0.0
    %1305 = vmatpush1.msra.mxu0 0.0
    %1306 = vmatprep.subr.mxu0 0.0
    %1307 = vmatpush1.msra.mxu0 0.0
    %1308 = vmatprep.subr.mxu0 0.0
    %1309 = vmatpush1.msra.mxu0 0.0
    %1310 = vmatprep.subr.mxu0 0.0
    %1311 = vmatpush1.msra.mxu0 0.0
    %1312 = vmatprep.subr.mxu0 0.0
    %1313 = vmatpush1.msra.mxu0 0.0
    %1314 = vmatprep.subr.mxu0 0.0
    %1315 = vmatpush1.msra.mxu0 0.0
    %1316 = vmatprep.subr.mxu0 0.0
    %1317 = vmatpush1.msra.mxu0 0.0
    %1318 = vmatprep.subr.mxu0 0.0
    %1319 = vmatpush1.msra.mxu0 0.0
    %1320 = vmatprep.subr.mxu0 0.0
    %1321 = vmatpush1.msra.mxu0 0.0
    %1322 = vmatprep.subr.mxu0 0.0
    %1323 = vmatpush1.msra.mxu0 0.0
    %1324 = vmatprep.subr.mxu0 0.0
    %1325 = vmatpush1.msra.mxu0 0.0
    %1326 = vmatprep.subr.mxu0 0.0
    %1327 = vmatpush1.msra.mxu0 0.0
    %1328 = vmatprep.subr.mxu0 0.0
    %1329 = vmatpush1.msra.mxu0 0.0
    %1330 = vmatprep.subr.mxu0 0.0
    %1331 = vmatpush1.msra.mxu0 0.0
    %1332 = vmatprep.subr.mxu0 0.0
    %1333 = vmatpush1.msra.mxu0 0.0
    %1334 = vmatprep.subr.mxu0 0.0
    %1335 = vmatpush1.msra.mxu0 0.0
    %1336 = vmatprep.subr.mxu0 0.0
    %1337 = vmatpush1.msra.mxu0 0.0
    %1338 = vmatprep.subr.mxu0 0.0
    %1339 = vmatpush1.msra.mxu0 0.0
    %1340 = vmatprep.subr.mxu0 0.0
    %1341 = vmatpush1.msra.mxu0 0.0
    %1342 = vmatprep.subr.mxu0 0.0
    %1343 = vmatpush1.msra.mxu0 0.0
    %1344 = vmatprep.subr.mxu0 0.0
    %1345 = vmatpush1.msra.mxu0 0.0
    %1346 = vmatprep.subr.mxu0 0.0
    %1347 = vmatpush1.msra.mxu0 0.0
    %1348 = vmatprep.subr.mxu0 0.0
    %1349 = vmatpush1.msra.mxu0 0.0
    %1350 = vmatprep.subr.mxu0 0.0
    %1351 = vmatpush1.msra.mxu0 0.0
    %1352 = vmatprep.mubr.f32.mxu0 0.0
    %1353 = vmatmul.mubr.f32.gmra.mrb[0].mxu0 %v1286
    %v1354 = vpop.f32.mrb[0].mxu0
    %v1355 = vadd.f32 0.0, %v1354
    %v1356 = vpop.f32.mrb[0].mxu0
    %1357 = vdwg.mxu0
    %v1358 = vadd.f32 %v1037, %v1355
    %v1359 = vmax.f32 %v1358, 0.0
    %v1361 = vsel %vm289, %v1359, 0
    %1363 = vmatprep.subr.mxu0 0.0
    %1364 = vmatpush1.msra.mxu0 %v894
    %1365 = vmatprep.subr.mxu0 0.0
    %1366 = vmatpush1.msra.mxu0 %v895
    %1367 = vmatprep.subr.mxu0 0.0
    %1368 = vmatpush1.msra.mxu0 %v896
    %1369 = vmatprep.subr.mxu0 0.0
    %1370 = vmatpush1.msra.mxu0 %v897
    %1371 = vmatprep.subr.mxu0 0.0
    %1372 = vmatpush1.msra.mxu0 0.0
    %1373 = vmatprep.subr.mxu0 0.0
    %1374 = vmatpush1.msra.mxu0 0.0
    %1375 = vmatprep.subr.mxu0 0.0
    %1376 = vmatpush1.msra.mxu0 0.0
    %1377 = vmatprep.subr.mxu0 0.0
    %1378 = vmatpush1.msra.mxu0 0.0
    %1379 = vmatprep.subr.mxu0 0.0
    %1380 = vmatpush1.msra.mxu0 0.0
    %1381 = vmatprep.subr.mxu0 0.0
    %1382 = vmatpush1.msra.mxu0 0.0
    %1383 = vmatprep.subr.mxu0 0.0
    %1384 = vmatpush1.msra.mxu0 0.0
    %1385 = vmatprep.subr.mxu0 0.0
    %1386 = vmatpush1.msra.mxu0 0.0
    %1387 = vmatprep.subr.mxu0 0.0
    %1388 = vmatpush1.msra.mxu0 0.0
    %1389 = vmatprep.subr.mxu0 0.0
    %1390 = vmatpush1.msra.mxu0 0.0
    %1391 = vmatprep.subr.mxu0 0.0
    %1392 = vmatpush1.msra.mxu0 0.0
    %1393 = vmatprep.subr.mxu0 0.0
    %1394 = vmatpush1.msra.mxu0 0.0
    %1395 = vmatprep.subr.mxu0 0.0
    %1396 = vmatpush1.msra.mxu0 0.0
    %1397 = vmatprep.subr.mxu0 0.0
    %1398 = vmatpush1.msra.mxu0 0.0
    %1399 = vmatprep.subr.mxu0 0.0
    %1400 = vmatpush1.msra.mxu0 0.0
    %1401 = vmatprep.subr.mxu0 0.0
    %1402 = vmatpush1.msra.mxu0 0.0
    %1403 = vmatprep.subr.mxu0 0.0
    %1404 = vmatpush1.msra.mxu0 0.0
    %1405 = vmatprep.subr.mxu0 0.0
    %1406 = vmatpush1.msra.mxu0 0.0
    %1407 = vmatprep.subr.mxu0 0.0
    %1408 = vmatpush1.msra.mxu0 0.0
    %1409 = vmatprep.subr.mxu0 0.0
    %1410 = vmatpush1.msra.mxu0 0.0
    %1411 = vmatprep.subr.mxu0 0.0
    %1412 = vmatpush1.msra.mxu0 0.0
    %1413 = vmatprep.subr.mxu0 0.0
    %1414 = vmatpush1.msra.mxu0 0.0
    %1415 = vmatprep.subr.mxu0 0.0
    %1416 = vmatpush1.msra.mxu0 0.0
    %1417 = vmatprep.subr.mxu0 0.0
    %1418 = vmatpush1.msra.mxu0 0.0
    %1419 = vmatprep.subr.mxu0 0.0
    %1420 = vmatpush1.msra.mxu0 0.0
    %1421 = vmatprep.subr.mxu0 0.0
    %1422 = vmatpush1.msra.mxu0 0.0
    %1423 = vmatprep.subr.mxu0 0.0
    %1424 = vmatpush1.msra.mxu0 0.0
    %1425 = vmatprep.subr.mxu0 0.0
    %1426 = vmatpush1.msra.mxu0 0.0
    %1427 = vmatprep.mubr.f32.mxu0 0.0
    %1428 = vmatmul.mubr.f32.gmra.mrb[0].mxu0 %v1361
    %v1429 = vpop.f32.mrb[0].mxu0
    %v1430 = vadd.f32 0.0, %v1429
    %v1431 = vpop.f32.mrb[0].mxu0
    %1432 = vdwg.mxu0
    %v1433 = vadd.f32 %v1045, %v1430
    %v1434 = vmax.f32 %v1433, 0.0
    %v1436 = vsel %vm289, %v1434, 0
    %1438 = vmatprep.subr.mxu0 0.0
    %1439 = vmatpush1.msra.mxu0 %v894
    %1440 = vmatprep.subr.mxu0 0.0
    %1441 = vmatpush1.msra.mxu0 %v895
    %1442 = vmatprep.subr.mxu0 0.0
    %1443 = vmatpush1.msra.mxu0 %v896
    %1444 = vmatprep.subr.mxu0 0.0
    %1445 = vmatpush1.msra.mxu0 %v897
    %1446 = vmatprep.subr.mxu0 0.0
    %1447 = vmatpush1.msra.mxu0 0.0
    %1448 = vmatprep.subr.mxu0 0.0
    %1449 = vmatpush1.msra.mxu0 0.0
    %1450 = vmatprep.subr.mxu0 0.0
    %1451 = vmatpush1.msra.mxu0 0.0
    %1452 = vmatprep.subr.mxu0 0.0
    %1453 = vmatpush1.msra.mxu0 0.0
    %1454 = vmatprep.subr.mxu0 0.0
    %1455 = vmatpush1.msra.mxu0 0.0
    %1456 = vmatprep.subr.mxu0 0.0
    %1457 = vmatpush1.msra.mxu0 0.0
    %1458 = vmatprep.subr.mxu0 0.0
    %1459 = vmatpush1.msra.mxu0 0.0
    %1460 = vmatprep.subr.mxu0 0.0
    %1461 = vmatpush1.msra.mxu0 0.0
    %1462 = vmatprep.subr.mxu0 0.0
    %1463 = vmatpush1.msra.mxu0 0.0
    %1464 = vmatprep.subr.mxu0 0.0
    %1465 = vmatpush1.msra.mxu0 0.0
    %1466 = vmatprep.subr.mxu0 0.0
    %1467 = vmatpush1.msra.mxu0 0.0
    %1468 = vmatprep.subr.mxu0 0.0
    %1469 = vmatpush1.msra.mxu0 0.0
    %1470 = vmatprep.subr.mxu0 0.0
    %1471 = vmatpush1.msra.mxu0 0.0
    %1472 = vmatprep.subr.mxu0 0.0
    %1473 = vmatpush1.msra.mxu0 0.0
    %1474 = vmatprep.subr.mxu0 0.0
    %1475 = vmatpush1.msra.mxu0 0.0
    %1476 = vmatprep.subr.mxu0 0.0
    %1477 = vmatpush1.msra.mxu0 0.0
    %1478 = vmatprep.subr.mxu0 0.0
    %1479 = vmatpush1.msra.mxu0 0.0
    %1480 = vmatprep.subr.mxu0 0.0
    %1481 = vmatpush1.msra.mxu0 0.0
    %1482 = vmatprep.subr.mxu0 0.0
    %1483 = vmatpush1.msra.mxu0 0.0
    %1484 = vmatprep.subr.mxu0 0.0
    %1485 = vmatpush1.msra.mxu0 0.0
    %1486 = vmatprep.subr.mxu0 0.0
    %1487 = vmatpush1.msra.mxu0 0.0
    %1488 = vmatprep.subr.mxu0 0.0
    %1489 = vmatpush1.msra.mxu0 0.0
    %1490 = vmatprep.subr.mxu0 0.0
    %1491 = vmatpush1.msra.mxu0 0.0
    %1492 = vmatprep.subr.mxu0 0.0
    %1493 = vmatpush1.msra.mxu0 0.0
    %1494 = vmatprep.subr.mxu0 0.0
    %1495 = vmatpush1.msra.mxu0 0.0
    %1496 = vmatprep.subr.mxu0 0.0
    %1497 = vmatpush1.msra.mxu0 0.0
    %1498 = vmatprep.subr.mxu0 0.0
    %1499 = vmatpush1.msra.mxu0 0.0
    %1500 = vmatprep.subr.mxu0 0.0
    %1501 = vmatpush1.msra.mxu0 0.0
    %1502 = vmatprep.mubr.f32.mxu0 0.0
    %1503 = vmatmul.mubr.f32.gmra.mrb[0].mxu0 %v1436
    %v1504 = vpop.f32.mrb[0].mxu0
    %v1505 = vadd.f32 0.0, %v1504
    %v1506 = vpop.f32.mrb[0].mxu0
    %1507 = vdwg.mxu0
    %v1508 = vadd.f32 %v1053, %v1505
    %v1509 = vmax.f32 %v1508, 0.0
    %v1511 = vsel %vm289, %v1509, 0
    %1513 = vmatprep.subr.mxu0 0.0
    %1514 = vmatpush1.msra.mxu0 %v894
    %1515 = vmatprep.subr.mxu0 0.0
    %1516 = vmatpush1.msra.mxu0 %v895
    %1517 = vmatprep.subr.mxu0 0.0
    %1518 = vmatpush1.msra.mxu0 %v896
    %1519 = vmatprep.subr.mxu0 0.0
    %1520 = vmatpush1.msra.mxu0 %v897
    %1521 = vmatprep.subr.mxu0 0.0
    %1522 = vmatpush1.msra.mxu0 0.0
    %1523 = vmatprep.subr.mxu0 0.0
    %1524 = vmatpush1.msra.mxu0 0.0
    %1525 = vmatprep.subr.mxu0 0.0
    %1526 = vmatpush1.msra.mxu0 0.0
    %1527 = vmatprep.subr.mxu0 0.0
    %1528 = vmatpush1.msra.mxu0 0.0
    %1529 = vmatprep.subr.mxu0 0.0
    %1530 = vmatpush1.msra.mxu0 0.0
    %1531 = vmatprep.subr.mxu0 0.0
    %1532 = vmatpush1.msra.mxu0 0.0
    %1533 = vmatprep.subr.mxu0 0.0
    %1534 = vmatpush1.msra.mxu0 0.0
    %1535 = vmatprep.subr.mxu0 0.0
    %1536 = vmatpush1.msra.mxu0 0.0
    %1537 = vmatprep.subr.mxu0 0.0
    %1538 = vmatpush1.msra.mxu0 0.0
    %1539 = vmatprep.subr.mxu0 0.0
    %1540 = vmatpush1.msra.mxu0 0.0
    %1541 = vmatprep.subr.mxu0 0.0
    %1542 = vmatpush1.msra.mxu0 0.0
    %1543 = vmatprep.subr.mxu0 0.0
    %1544 = vmatpush1.msra.mxu0 0.0
    %1545 = vmatprep.subr.mxu0 0.0
    %1546 = vmatpush1.msra.mxu0 0.0
    %1547 = vmatprep.subr.mxu0 0.0
    %1548 = vmatpush1.msra.mxu0 0.0
    %1549 = vmatprep.subr.mxu0 0.0
    %1550 = vmatpush1.msra.mxu0 0.0
    %1551 = vmatprep.subr.mxu0 0.0
    %1552 = vmatpush1.msra.mxu0 0.0
    %1553 = vmatprep.subr.mxu0 0.0
    %1554 = vmatpush1.msra.mxu0 0.0
    %1555 = vmatprep.subr.mxu0 0.0
    %1556 = vmatpush1.msra.mxu0 0.0
    %1557 = vmatprep.subr.mxu0 0.0
    %1558 = vmatpush1.msra.mxu0 0.0
    %1559 = vmatprep.subr.mxu0 0.0
    %1560 = vmatpush1.msra.mxu0 0.0
    %1561 = vmatprep.subr.mxu0 0.0
    %1562 = vmatpush1.msra.mxu0 0.0
    %1563 = vmatprep.subr.mxu0 0.0
    %1564 = vmatpush1.msra.mxu0 0.0
    %1565 = vmatprep.subr.mxu0 0.0
    %1566 = vmatpush1.msra.mxu0 0.0
    %1567 = vmatprep.subr.mxu0 0.0
    %1568 = vmatpush1.msra.mxu0 0.0
    %1569 = vmatprep.subr.mxu0 0.0
    %1570 = vmatpush1.msra.mxu0 0.0
    %1571 = vmatprep.subr.mxu0 0.0
    %1572 = vmatpush1.msra.mxu0 0.0
    %1573 = vmatprep.subr.mxu0 0.0
    %1574 = vmatpush1.msra.mxu0 0.0
    %1575 = vmatprep.subr.mxu0 0.0
    %1576 = vmatpush1.msra.mxu0 0.0
    %1577 = vmatprep.mubr.f32.mxu0 0.0
    %1578 = vmatmul.mubr.f32.gmra.mrb[0].mxu0 %v1511
    %v1579 = vpop.f32.mrb[0].mxu0
    %v1580 = vadd.f32 0.0, %v1579
    %v1581 = vpop.f32.mrb[0].mxu0
    %1582 = vdwg.mxu0
    %v1583 = vadd.f32 %v1052, %v1580
    %v1584 = vmax.f32 %v1583, 0.0
    %v1586 = vsel %vm289, %v1584, 0
    %1588 = vmatprep.subr.mxu0 0.0
    %1589 = vmatpush1.msra.mxu0 %v894
    %1590 = vmatprep.subr.mxu0 0.0
    %1591 = vmatpush1.msra.mxu0 %v895
    %1592 = vmatprep.subr.mxu0 0.0
    %1593 = vmatpush1.msra.mxu0 %v896
    %1594 = vmatprep.subr.mxu0 0.0
    %1595 = vmatpush1.msra.mxu0 %v897
    %1596 = vmatprep.subr.mxu0 0.0
    %1597 = vmatpush1.msra.mxu0 0.0
    %1598 = vmatprep.subr.mxu0 0.0
    %1599 = vmatpush1.msra.mxu0 0.0
    %1600 = vmatprep.subr.mxu0 0.0
    %1601 = vmatpush1.msra.mxu0 0.0
    %1602 = vmatprep.subr.mxu0 0.0
    %1603 = vmatpush1.msra.mxu0 0.0
    %1604 = vmatprep.subr.mxu0 0.0
    %1605 = vmatpush1.msra.mxu0 0.0
    %1606 = vmatprep.subr.mxu0 0.0
    %1607 = vmatpush1.msra.mxu0 0.0
    %1608 = vmatprep.subr.mxu0 0.0
    %1609 = vmatpush1.msra.mxu0 0.0
    %1610 = vmatprep.subr.mxu0 0.0
    %1611 = vmatpush1.msra.mxu0 0.0
    %1612 = vmatprep.subr.mxu0 0.0
    %1613 = vmatpush1.msra.mxu0 0.0
    %1614 = vmatprep.subr.mxu0 0.0
    %1615 = vmatpush1.msra.mxu0 0.0
    %1616 = vmatprep.subr.mxu0 0.0
    %1617 = vmatpush1.msra.mxu0 0.0
    %1618 = vmatprep.subr.mxu0 0.0
    %1619 = vmatpush1.msra.mxu0 0.0
    %1620 = vmatprep.subr.mxu0 0.0
    %1621 = vmatpush1.msra.mxu0 0.0
    %1622 = vmatprep.subr.mxu0 0.0
    %1623 = vmatpush1.msra.mxu0 0.0
    %1624 = vmatprep.subr.mxu0 0.0
    %1625 = vmatpush1.msra.mxu0 0.0
    %1626 = vmatprep.subr.mxu0 0.0
    %1627 = vmatpush1.msra.mxu0 0.0
    %1628 = vmatprep.subr.mxu0 0.0
    %1629 = vmatpush1.msra.mxu0 0.0
    %1630 = vmatprep.subr.mxu0 0.0
    %1631 = vmatpush1.msra.mxu0 0.0
    %1632 = vmatprep.subr.mxu0 0.0
    %1633 = vmatpush1.msra.mxu0 0.0
    %1634 = vmatprep.subr.mxu0 0.0
    %1635 = vmatpush1.msra.mxu0 0.0
    %1636 = vmatprep.subr.mxu0 0.0
    %1637 = vmatpush1.msra.mxu0 0.0
    %1638 = vmatprep.subr.mxu0 0.0
    %1639 = vmatpush1.msra.mxu0 0.0
    %1640 = vmatprep.subr.mxu0 0.0
    %1641 = vmatpush1.msra.mxu0 0.0
    %1642 = vmatprep.subr.mxu0 0.0
    %1643 = vmatpush1.msra.mxu0 0.0
    %1644 = vmatprep.subr.mxu0 0.0
    %1645 = vmatpush1.msra.mxu0 0.0
    %1646 = vmatprep.subr.mxu0 0.0
    %1647 = vmatpush1.msra.mxu0 0.0
    %1648 = vmatprep.subr.mxu0 0.0
    %1649 = vmatpush1.msra.mxu0 0.0
    %1650 = vmatprep.subr.mxu0 0.0
    %1651 = vmatpush1.msra.mxu0 0.0
    %1652 = vmatprep.mubr.f32.mxu0 0.0
    %1653 = vmatmul.mubr.f32.gmra.mrb[0].mxu0 %v1586
    %v1654 = vpop.f32.mrb[0].mxu0
    %v1655 = vadd.f32 0.0, %v1654
    %v1656 = vpop.f32.mrb[0].mxu0
    %1657 = vdwg.mxu0
    %v1658 = vadd.f32 %v1054, %v1655
    %v1659 = vmax.f32 %v1658, 0.0
    %v1660 = vld [vmem:[%s7] sm:$0x1]
    %v1662 = vlaneseq
    %v1663 = vshrl.u32 %v1662, 7
    %v1664 = vsub.s32 0, %v1663
    %v1665 = vrot.slane %v1660, %v1664
    %v1667 = vmul.f32 %v1659, %v1665
    %vm1668 = vcmask 254976
    %v1669 = vsel %vm1668, %v1667, 0.0
    %1670 = vadd.xlane.f32.xlu0 %v1669
    %v1671 = vpop.xlane.xlu0 %1670
    %v1672 = vld [vmem:[#allocation2] sm:$0x1]
    %v1674 = vlaneseq
    %v1675 = vshrl.u32 %v1674, 7
    %v1676 = vsub.s32 0, %v1675
    %v1677 = vrot.slane %v1672, %v1676
    %v1679 = vadd.f32 %v1671, %v1677
    %vm1680 = vcmask 1024
    %1681 = vst.msk [vmem:[%s9] sm:$0x3] %vm1680, %v1679
    // Predicated region
    $region58: #{tpu_custom_call.1} parent=1 // pred_check
      _
    $region59: #{tpu_custom_call.1} parent=1 // pred_check_branch
      %1683 = sbr.rel (0) target = $region61
    $region60: #{tpu_custom_call.1} parent=1 // pred_region
      _
    $region61: #{tpu_custom_call.1} parent=1 // pred_fallthru
      _
    // Predicated region
    $region62: #{tpu_custom_call.1} parent=1 // pred_check
      _
    $region63: #{tpu_custom_call.1} parent=1 // pred_check_branch
      %1685 = sbr.rel (0) target = $region65
    $region64: #{tpu_custom_call.1} parent=1 // pred_region
      _
    $region65: #{tpu_custom_call.1} parent=1 // pred_fallthru
      _
    %1686 = vsyncpa [#allocation4], 1
    %1687 = vsyncpa [#allocation6], 1
    %1688 = vsyncpa [#allocation9], 1

</llo_original>
